<compile_context>
chip_gen: v6e
topology: v6e:2x2x1
jax: 0.10.0
libtpu: 0.0.40
codegen_flags: <defaults>
</compile_context>

<pallas_src>
import numpy as np
import jax
import jax.numpy as jnp
from jax.experimental import pallas as pl
from jax.experimental.pallas import tpu as pltpu


# --------------------------------- kernel ---------------------------------
def _avgpool_kernel(x_ref, p_ref, o_ref):
    # x_ref: (TP, G*2*W)   p_ref: (G*2*W, G*Wo)   o_ref: (TP, G*Wo)
    acc = jnp.dot(
        x_ref[...].astype(jnp.float32),
        p_ref[...],
        preferred_element_type=jnp.float32,
        precision=jax.lax.Precision.HIGHEST,
    )
    o_ref[...] = acc.astype(o_ref.dtype)


# ------------------------------ tiling helpers -----------------------------
def _pick_group(num_pairs, W, Wo, max_p_bytes=2 << 20, lane_target=128):
    """Pick G (a divisor of num_pairs): pack G independent h-row pairs per
    matmul row so the output lane width G*Wo reaches >=128 (dense stores)
    while keeping the block-diagonal pooling matrix small."""
    best = 1
    for g in range(1, num_pairs + 1):
        if num_pairs % g:
            continue
        p_bytes = (g * 2 * W) * (g * Wo) * 4
        if p_bytes > max_p_bytes or g * Wo > 8 * lane_target:
            break
        best = g
        if g * Wo >= lane_target:
            break
    return best


def _pick_row_tile(num_rows, row_bytes, target_bytes=2 << 20):
    """Largest multiple-of-8 divisor of num_rows whose input block stays under
    the VMEM target; falls back to the full extent (allowed by BlockSpec)."""
    want = max(8, target_bytes // max(row_bytes, 1))
    best = None
    t = 8
    while t <= min(num_rows, want):
        if num_rows % t == 0:
            best = t
        t += 8
    return best if best is not None else num_rows


def _pool_matrix(W, Wo, G):
    """Block-diagonal (G*2W, G*Wo) matrix: each (2W, Wo) block averages the
    2x2 window {top[2wo], top[2wo+1], bot[2wo], bot[2wo+1]} with weight 0.25."""
    blk = np.zeros((2 * W, Wo), np.float32)
    wo = np.arange(Wo)
    for off in (0, 1):
        blk[2 * wo + off, wo] = 0.25          # top h-row of the pair
        blk[W + 2 * wo + off, wo] = 0.25      # bottom h-row of the pair
    if G == 1:
        return blk
    P = np.zeros((G * 2 * W, G * Wo), np.float32)
    for g in range(G):
        P[g * 2 * W:(g + 1) * 2 * W, g * Wo:(g + 1) * Wo] = blk
    return P


# --------------------------------- wrapper ---------------------------------
@jax.jit
def downsample_forward(x):
    """AvgPool3d(kernel=(1,2,2), stride=(1,2,2), padding=0) on NCDHW input."""
    N, C, D, H, W = x.shape
    Ho, Wo = H // 2, W // 2
    # PyTorch floor behaviour for odd H/W: drop the trailing row/col (no-op when even).
    x = x[:, :, :, : 2 * Ho, : 2 * Wo]
    W = 2 * Wo

    num_pairs = N * C * D * Ho                 # one h-row pair per output (n,c,d,ho) row
    G = _pick_group(num_pairs, W, Wo)
    Kin, Nout = G * 2 * W, G * Wo
    RM = num_pairs // G

    xg = x.reshape(RM, Kin)                    # pure row-major view, no copy
    P = jnp.asarray(_pool_matrix(W, Wo, G))

    TP = _pick_row_tile(RM, Kin * x.dtype.itemsize)
    grid = (RM // TP,)

    y = pl.pallas_call(
        _avgpool_kernel,
        grid=grid,
        out_shape=jax.ShapeDtypeStruct((RM, Nout), x.dtype),
        in_specs=[
            pl.BlockSpec((TP, Kin), lambda i: (i, 0)),
            pl.BlockSpec((Kin, Nout), lambda i: (0, 0)),   # resident pooling matrix
        ],
        out_specs=pl.BlockSpec((TP, Nout), lambda i: (i, 0)),
        compiler_params=pltpu.CompilerParams(
            dimension_semantics=("parallel",),             # v7x: row blocks over 2 TCs
            vmem_limit_bytes=32 * 1024 * 1024,             # fits v5e/v6e/v7x VMEM budgets
        ),
    )(xg, P)

    return y.reshape(N, C, D, Ho, Wo)          # pure view back to NCDHW


# ----------------------------- pure-JAX reference ---------------------------
def _ref_forward(x):
    s = jax.lax.reduce_window(
        x, 0.0, jax.lax.add,
        window_dimensions=(1, 1, 1, 2, 2),
        window_strides=(1, 1, 1, 2, 2),
        padding="VALID",
    )
    return s * 0.25


if __name__ == "__main__":
    N, C, D, H, W = 2, 4, 8, 16, 16
    x = jax.random.normal(jax.random.PRNGKey(0), (N, C, D, H, W), jnp.float32)

    out = jax.block_until_ready(downsample_forward(x))
    assert out.shape == (N, C, D, H // 2, W // 2), out.shape

    ref = jax.block_until_ready(_ref_forward(x))
    np.testing.assert_allclose(np.asarray(out), np.asarray(ref),
                               rtol=1e-4, atol=1e-4)
    print("KERNEL_OK")
</pallas_src>

<mosaic_0001>
module attributes {stable_mosaic.version = 11 : i64} {
  func.func @_avgpool_kernel(%arg0: i32, %arg1: memref<32x512xf32, #tpu.memory_space<vmem>>, %arg2: memref<512x128xf32, #tpu.memory_space<vmem>>, %arg3: memref<32x128xf32, #tpu.memory_space<vmem>>) attributes {dimension_semantics = [#tpu.dimension_semantics<parallel>], iteration_bounds = array<i64: 1>, scalar_prefetch = 0 : i64, scratch_operands = 0 : i64, tpu.core_type = #tpu.core_type<tc>, window_params = [{transform_indices = @transform_0, window_bounds = array<i64: 32, 512>}, {pipeline_mode = #tpu.pipeline_mode<synchronous>, transform_indices = @transform_1, window_bounds = array<i64: 512, 128>}, {transform_indices = @transform_2, window_bounds = array<i64: 32, 128>}]} {
    %c0 = arith.constant 0 : index
    %c0_0 = arith.constant 0 : index
    %0 = vector.load %arg1[%c0, %c0_0] : memref<32x512xf32, #tpu.memory_space<vmem>>, vector<32x512xf32>
    %c0_1 = arith.constant 0 : index
    %c0_2 = arith.constant 0 : index
    %1 = vector.load %arg2[%c0_1, %c0_2] : memref<512x128xf32, #tpu.memory_space<vmem>>, vector<512x128xf32>
    %cst = arith.constant dense<0.000000e+00> : vector<32x128xf32>
    %2 = tpu.matmul %0, %1, %cst {dimension_numbers = #tpu.dot_dimension_numbers<[1], [0], [0], [1], [0, 0, 1, 1], [], []>, precision = #tpu.contract_precision<fp32>} : vector<32x512xf32>, vector<512x128xf32>, vector<32x128xf32> -> vector<32x128xf32>
    %c0_3 = arith.constant 0 : index
    %c0_4 = arith.constant 0 : index
    %3 = vector.load %arg3[%c0_3, %c0_4] : memref<32x128xf32, #tpu.memory_space<vmem>>, vector<32x128xf32>
    tpu.vector_store %arg3[%c0_3, %c0_4], %2 {strides = array<i32>} : memref<32x128xf32, #tpu.memory_space<vmem>>, vector<32x128xf32>,
    return
  }
  func.func @transform_0(%arg0: i32) -> (i32, i32) {
    %c0_i32 = arith.constant 0 : i32
    %c0_i32_0 = arith.constant 0 : i32
    return %arg0, %c0_i32 : i32, i32
  }
  func.func @transform_1(%arg0: i32) -> (i32, i32) {
    %c0_i32 = arith.constant 0 : i32
    %c0_i32_0 = arith.constant 0 : i32
    %c0_i32_1 = arith.constant 0 : i32
    return %c0_i32, %c0_i32_0 : i32, i32
  }
  func.func @transform_2(%arg0: i32) -> (i32, i32) {
    %c0_i32 = arith.constant 0 : i32
    %c0_i32_0 = arith.constant 0 : i32
    return %arg0, %c0_i32 : i32, i32
  }
}

</mosaic_0001>

<llo_original>
// kernel: downsample_forward.1
$region0: #{downsample_forward.1}
  #allocation0 [shape = 'u32[]', space=smem, size = 0x4, offset = 0x4, fixed_abs, tag = 'smem constant byte address 0x4 - core index']
  #allocation1 [shape = 'u32[144,128]{1,0:T(1,128)}', space=vmem, size = 0x12000, scoped, tag = 'internal scratch']
  %s0 = inlined_call_operand.vmem [shape: f32[32,512], index: 0, kind: input, shape index: {}]
  %s1 = inlined_call_operand.vmem [shape: f32[512,128], index: 1, kind: input, shape index: {}]
  %s2 = inlined_call_operand.vmem [shape: f32[32,128], index: 2, kind: output, shape index: {}]
  %s3 = sld [smem:[#allocation0]]
  $region18: #{downsample_forward.1} parent=0
    _
  %s5 = ssub.s32 1, %s3
  %s6 = scalar_select 0, %s5, %s3
  // Predicated region
  $region2: #{downsample_forward.1} parent=0 // pred_check
    _
  $region3: #{downsample_forward.1} parent=0 // pred_check_branch
    %8 = sbr.rel (0) target = $region5
  $region4: #{downsample_forward.1} parent=0 // pred_region
    _
  $region5: #{downsample_forward.1} parent=0 // pred_fallthru
    _
  // Predicated region
  $region6: #{downsample_forward.1} parent=0 // pred_check
    _
  $region7: #{downsample_forward.1} parent=0 // pred_check_branch
    %10 = sbr.rel (0) target = $region9
  $region8: #{downsample_forward.1} parent=0 // pred_region
    _
  $region9: #{downsample_forward.1} parent=0 // pred_fallthru
    _
  %v11 = vld [vmem:[%s0] sm:$0xff]
  %v12 = vld [vmem:[%s0 + $0x8] sm:$0xff]
  %v13 = vld [vmem:[%s0 + $0x10] sm:$0xff]
  %v14 = vld [vmem:[%s0 + $0x18] sm:$0xff]
  %v15 = vld [vmem:[%s0 + $0x20] sm:$0xff]
  %v16 = vld [vmem:[%s0 + $0x28] sm:$0xff]
  %v17 = vld [vmem:[%s0 + $0x30] sm:$0xff]
  %v18 = vld [vmem:[%s0 + $0x38] sm:$0xff]
  %v19 = vld [vmem:[%s0 + $0x40] sm:$0xff]
  %v20 = vld [vmem:[%s0 + $0x48] sm:$0xff]
  %v21 = vld [vmem:[%s0 + $0x50] sm:$0xff]
  %v22 = vld [vmem:[%s0 + $0x58] sm:$0xff]
  %v23 = vld [vmem:[%s0 + $0x60] sm:$0xff]
  %v24 = vld [vmem:[%s0 + $0x68] sm:$0xff]
  %v25 = vld [vmem:[%s0 + $0x70] sm:$0xff]
  %v26 = vld [vmem:[%s0 + $0x78] sm:$0xff]
  %v27 = vld [vmem:[%s1] sm:$0xff]
  %v28 = vld [vmem:[%s1 + $0x8] sm:$0xff]
  %v29 = vld [vmem:[%s1 + $0x10] sm:$0xff]
  %v30 = vld [vmem:[%s1 + $0x18] sm:$0xff]
  %v31 = vld [vmem:[%s1 + $0x20] sm:$0xff]
  %v32 = vld [vmem:[%s1 + $0x28] sm:$0xff]
  %v33 = vld [vmem:[%s1 + $0x30] sm:$0xff]
  %v34 = vld [vmem:[%s1 + $0x38] sm:$0xff]
  %v35 = vld [vmem:[%s1 + $0x40] sm:$0xff]
  %v36 = vld [vmem:[%s1 + $0x48] sm:$0xff]
  %v37 = vld [vmem:[%s1 + $0x50] sm:$0xff]
  %v38 = vld [vmem:[%s1 + $0x58] sm:$0xff]
  %v39 = vld [vmem:[%s1 + $0x60] sm:$0xff]
  %v40 = vld [vmem:[%s1 + $0x68] sm:$0xff]
  %v41 = vld [vmem:[%s1 + $0x70] sm:$0xff]
  %v42 = vld [vmem:[%s1 + $0x78] sm:$0xff]
  %v43 = vld [vmem:[%s1 + $0x80] sm:$0xff]
  %v44 = vld [vmem:[%s1 + $0x88] sm:$0xff]
  %v45 = vld [vmem:[%s1 + $0x90] sm:$0xff]
  %v46 = vld [vmem:[%s1 + $0x98] sm:$0xff]
  %v47 = vld [vmem:[%s1 + $0xa0] sm:$0xff]
  %v48 = vld [vmem:[%s1 + $0xa8] sm:$0xff]
  %v49 = vld [vmem:[%s1 + $0xb0] sm:$0xff]
  %v50 = vld [vmem:[%s1 + $0xb8] sm:$0xff]
  %v51 = vld [vmem:[%s1 + $0xc0] sm:$0xff]
  %v52 = vld [vmem:[%s1 + $0xc8] sm:$0xff]
  %v53 = vld [vmem:[%s1 + $0xd0] sm:$0xff]
  %v54 = vld [vmem:[%s1 + $0xd8] sm:$0xff]
  %v55 = vld [vmem:[%s1 + $0xe0] sm:$0xff]
  %v56 = vld [vmem:[%s1 + $0xe8] sm:$0xff]
  %v57 = vld [vmem:[%s1 + $0xf0] sm:$0xff]
  %v58 = vld [vmem:[%s1 + $0xf8] sm:$0xff]
  %v59 = vld [vmem:[%s1 + $0x100] sm:$0xff]
  %v60 = vld [vmem:[%s1 + $0x108] sm:$0xff]
  %v61 = vld [vmem:[%s1 + $0x110] sm:$0xff]
  %v62 = vld [vmem:[%s1 + $0x118] sm:$0xff]
  %v63 = vld [vmem:[%s1 + $0x120] sm:$0xff]
  %v64 = vld [vmem:[%s1 + $0x128] sm:$0xff]
  %v65 = vld [vmem:[%s1 + $0x130] sm:$0xff]
  %v66 = vld [vmem:[%s1 + $0x138] sm:$0xff]
  %v67 = vld [vmem:[%s1 + $0x140] sm:$0xff]
  %v68 = vld [vmem:[%s1 + $0x148] sm:$0xff]
  %v69 = vld [vmem:[%s1 + $0x150] sm:$0xff]
  %v70 = vld [vmem:[%s1 + $0x158] sm:$0xff]
  %v71 = vld [vmem:[%s1 + $0x160] sm:$0xff]
  %v72 = vld [vmem:[%s1 + $0x168] sm:$0xff]
  %v73 = vld [vmem:[%s1 + $0x170] sm:$0xff]
  %v74 = vld [vmem:[%s1 + $0x178] sm:$0xff]
  %v75 = vld [vmem:[%s1 + $0x180] sm:$0xff]
  %v76 = vld [vmem:[%s1 + $0x188] sm:$0xff]
  %v77 = vld [vmem:[%s1 + $0x190] sm:$0xff]
  %v78 = vld [vmem:[%s1 + $0x198] sm:$0xff]
  %v79 = vld [vmem:[%s1 + $0x1a0] sm:$0xff]
  %v80 = vld [vmem:[%s1 + $0x1a8] sm:$0xff]
  %v81 = vld [vmem:[%s1 + $0x1b0] sm:$0xff]
  %v82 = vld [vmem:[%s1 + $0x1b8] sm:$0xff]
  %v83 = vld [vmem:[%s1 + $0x1c0] sm:$0xff]
  %v84 = vld [vmem:[%s1 + $0x1c8] sm:$0xff]
  %v85 = vld [vmem:[%s1 + $0x1d0] sm:$0xff]
  %v86 = vld [vmem:[%s1 + $0x1d8] sm:$0xff]
  %v87 = vld [vmem:[%s1 + $0x1e0] sm:$0xff]
  %v88 = vld [vmem:[%s1 + $0x1e8] sm:$0xff]
  %v89 = vld [vmem:[%s1 + $0x1f0] sm:$0xff]
  %v90 = vld [vmem:[%s1 + $0x1f8] sm:$0xff]
  %91 = vmatprep.subr.mxu0 0.0
  %v92 = vand.u32 %v42, 4294901760
  %93 = vmatpush1.msra.mxu0 %v92
  %94 = vmatprep.subr.mxu0 0.0
  %v95 = vand.u32 %v41, 4294901760
  %96 = vmatpush1.msra.mxu0 %v95
  %97 = vmatprep.subr.mxu0 0.0
  %v98 = vand.u32 %v40, 4294901760
  %99 = vmatpush1.msra.mxu0 %v98
  %100 = vmatprep.subr.mxu0 0.0
  %v101 = vand.u32 %v39, 4294901760
  %102 = vmatpush1.msra.mxu0 %v101
  %103 = vmatprep.subr.mxu0 0.0
  %v104 = vand.u32 %v38, 4294901760
  %105 = vmatpush1.msra.mxu0 %v104
  %106 = vmatprep.subr.mxu0 0.0
  %v107 = vand.u32 %v37, 4294901760
  %108 = vmatpush1.msra.mxu0 %v107
  %109 = vmatprep.subr.mxu0 0.0
  %v110 = vand.u32 %v36, 4294901760
  %111 = vmatpush1.msra.mxu0 %v110
  %112 = vmatprep.subr.mxu0 0.0
  %v113 = vand.u32 %v35, 4294901760
  %114 = vmatpush1.msra.mxu0 %v113
  %115 = vmatprep.subr.mxu0 0.0
  %v116 = vand.u32 %v34, 4294901760
  %117 = vmatpush1.msra.mxu0 %v116
  %118 = vmatprep.subr.mxu0 0.0
  %v119 = vand.u32 %v33, 4294901760
  %120 = vmatpush1.msra.mxu0 %v119
  %121 = vmatprep.subr.mxu0 0.0
  %v122 = vand.u32 %v32, 4294901760
  %123 = vmatpush1.msra.mxu0 %v122
  %124 = vmatprep.subr.mxu0 0.0
  %v125 = vand.u32 %v31, 4294901760
  %126 = vmatpush1.msra.mxu0 %v125
  %127 = vmatprep.subr.mxu0 0.0
  %v128 = vand.u32 %v30, 4294901760
  %129 = vmatpush1.msra.mxu0 %v128
  %130 = vmatprep.subr.mxu0 0.0
  %v131 = vand.u32 %v29, 4294901760
  %132 = vmatpush1.msra.mxu0 %v131
  %133 = vmatprep.subr.mxu0 0.0
  %v134 = vand.u32 %v28, 4294901760
  %135 = vmatpush1.msra.mxu0 %v134
  %136 = vmatprep.subr.mxu0 0.0
  %v137 = vand.u32 %v27, 4294901760
  %138 = vmatpush1.msra.mxu0 %v137
  %139 = vmatprep.subr.mxu0 0.0
  %v140 = vand.u32 %v58, 4294901760
  %141 = vmatpush2.msra.mxu0 %v140
  %142 = vmatprep.subr.mxu0 0.0
  %v143 = vand.u32 %v57, 4294901760
  %144 = vmatpush2.msra.mxu0 %v143
  %145 = vmatprep.subr.mxu0 0.0
  %v146 = vand.u32 %v56, 4294901760
  %147 = vmatpush2.msra.mxu0 %v146
  %148 = vmatprep.subr.mxu0 0.0
  %v149 = vand.u32 %v55, 4294901760
  %150 = vmatpush2.msra.mxu0 %v149
  %151 = vmatprep.subr.mxu0 0.0
  %v152 = vand.u32 %v54, 4294901760
  %153 = vmatpush2.msra.mxu0 %v152
  %154 = vmatprep.subr.mxu0 0.0
  %v155 = vand.u32 %v53, 4294901760
  %156 = vmatpush2.msra.mxu0 %v155
  %157 = vmatprep.subr.mxu0 0.0
  %v158 = vand.u32 %v52, 4294901760
  %159 = vmatpush2.msra.mxu0 %v158
  %160 = vmatprep.subr.mxu0 0.0
  %v161 = vand.u32 %v51, 4294901760
  %162 = vmatpush2.msra.mxu0 %v161
  %163 = vmatprep.subr.mxu0 0.0
  %v164 = vand.u32 %v50, 4294901760
  %165 = vmatpush2.msra.mxu0 %v164
  %166 = vmatprep.subr.mxu0 0.0
  %v167 = vand.u32 %v49, 4294901760
  %168 = vmatpush2.msra.mxu0 %v167
  %169 = vmatprep.subr.mxu0 0.0
  %v170 = vand.u32 %v48, 4294901760
  %171 = vmatpush2.msra.mxu0 %v170
  %172 = vmatprep.subr.mxu0 0.0
  %v173 = vand.u32 %v47, 4294901760
  %174 = vmatpush2.msra.mxu0 %v173
  %175 = vmatprep.subr.mxu0 0.0
  %v176 = vand.u32 %v46, 4294901760
  %177 = vmatpush2.msra.mxu0 %v176
  %178 = vmatprep.subr.mxu0 0.0
  %v179 = vand.u32 %v45, 4294901760
  %180 = vmatpush2.msra.mxu0 %v179
  %181 = vmatprep.subr.mxu0 0.0
  %v182 = vand.u32 %v44, 4294901760
  %183 = vmatpush2.msra.mxu0 %v182
  %184 = vmatprep.subr.mxu0 0.0
  %v185 = vand.u32 %v43, 4294901760
  %186 = vmatpush2.msra.mxu0 %v185
  %v187 = vand.u32 %v12, 4294901760
  %v188 = vsub.f32 %v12, %v187
  %v189 = vand.u32 %v188, 4294901760
  %v190 = vsub.f32 %v188, %v189
  %v191 = vand.u32 %v190, 4294901760
  %192 = vmatprep.mubr.f32.mxu0 %v191
  %v193 = vand.u32 %v11, 4294901760
  %v194 = vsub.f32 %v11, %v193
  %v195 = vand.u32 %v194, 4294901760
  %v196 = vsub.f32 %v194, %v195
  %v197 = vand.u32 %v196, 4294901760
  %198 = vmatmul.mubr.f32.gmra.mxu0 %v197
  %v199 = vpop.f32.mrf.mxu0
  %v200 = vadd.f32 0.0, %v199
  %v201 = vpop.f32.mrf.mxu0
  %v202 = vand.u32 %v16, 4294901760
  %v203 = vsub.f32 %v16, %v202
  %v204 = vand.u32 %v203, 4294901760
  %v205 = vsub.f32 %v203, %v204
  %v206 = vand.u32 %v205, 4294901760
  %207 = vmatprep.mubr.f32.mxu0 %v206
  %v208 = vand.u32 %v15, 4294901760
  %v209 = vsub.f32 %v15, %v208
  %v210 = vand.u32 %v209, 4294901760
  %v211 = vsub.f32 %v209, %v210
  %v212 = vand.u32 %v211, 4294901760
  %213 = vmatmul.mubr.f32.gmra.mxu0 %v212
  %v214 = vpop.f32.mrf.mxu0
  %v215 = vadd.f32 0.0, %v214
  %v216 = vpop.f32.mrf.mxu0
  %v217 = vand.u32 %v20, 4294901760
  %v218 = vsub.f32 %v20, %v217
  %v219 = vand.u32 %v218, 4294901760
  %v220 = vsub.f32 %v218, %v219
  %v221 = vand.u32 %v220, 4294901760
  %222 = vmatprep.mubr.f32.mxu0 %v221
  %v223 = vand.u32 %v19, 4294901760
  %v224 = vsub.f32 %v19, %v223
  %v225 = vand.u32 %v224, 4294901760
  %v226 = vsub.f32 %v224, %v225
  %v227 = vand.u32 %v226, 4294901760
  %228 = vmatmul.mubr.f32.gmra.mxu0 %v227
  %v229 = vpop.f32.mrf.mxu0
  %v230 = vadd.f32 0.0, %v229
  %v231 = vpop.f32.mrf.mxu0
  %v232 = vand.u32 %v24, 4294901760
  %v233 = vsub.f32 %v24, %v232
  %v234 = vand.u32 %v233, 4294901760
  %v235 = vsub.f32 %v233, %v234
  %v236 = vand.u32 %v235, 4294901760
  %237 = vmatprep.mubr.f32.mxu0 %v236
  %v238 = vand.u32 %v23, 4294901760
  %v239 = vsub.f32 %v23, %v238
  %v240 = vand.u32 %v239, 4294901760
  %v241 = vsub.f32 %v239, %v240
  %v242 = vand.u32 %v241, 4294901760
  %243 = vmatmul.mubr.f32.gmra.mxu0 %v242
  %v244 = vpop.f32.mrf.mxu0
  %v245 = vadd.f32 0.0, %v244
  %v246 = vpop.f32.mrf.mxu0
  %247 = vdwg.mxu0
  %248 = vmatprep.subr.mxu0 0.0
  %v249 = vand.u32 %v42, 4294901760
  %v250 = vsub.f32 %v42, %v249
  %v251 = vand.u32 %v250, 4294901760
  %v252 = vsub.f32 %v250, %v251
  %v253 = vand.u32 %v252, 4294901760
  %254 = vmatpush1.msra.mxu0 %v253
  %255 = vmatprep.subr.mxu0 0.0
  %v256 = vand.u32 %v41, 4294901760
  %v257 = vsub.f32 %v41, %v256
  %v258 = vand.u32 %v257, 4294901760
  %v259 = vsub.f32 %v257, %v258
  %v260 = vand.u32 %v259, 4294901760
  %261 = vmatpush1.msra.mxu0 %v260
  %262 = vmatprep.subr.mxu0 0.0
  %v263 = vand.u32 %v40, 4294901760
  %v264 = vsub.f32 %v40, %v263
  %v265 = vand.u32 %v264, 4294901760
  %v266 = vsub.f32 %v264, %v265
  %v267 = vand.u32 %v266, 4294901760
  %268 = vmatpush1.msra.mxu0 %v267
  %269 = vmatprep.subr.mxu0 0.0
  %v270 = vand.u32 %v39, 4294901760
  %v271 = vsub.f32 %v39, %v270
  %v272 = vand.u32 %v271, 4294901760
  %v273 = vsub.f32 %v271, %v272
  %v274 = vand.u32 %v273, 4294901760
  %275 = vmatpush1.msra.mxu0 %v274
  %276 = vmatprep.subr.mxu0 0.0
  %v277 = vand.u32 %v38, 4294901760
  %v278 = vsub.f32 %v38, %v277
  %v279 = vand.u32 %v278, 4294901760
  %v280 = vsub.f32 %v278, %v279
  %v281 = vand.u32 %v280, 4294901760
  %282 = vmatpush1.msra.mxu0 %v281
  %283 = vmatprep.subr.mxu0 0.0
  %v284 = vand.u32 %v37, 4294901760
  %v285 = vsub.f32 %v37, %v284
  %v286 = vand.u32 %v285, 4294901760
  %v287 = vsub.f32 %v285, %v286
  %v288 = vand.u32 %v287, 4294901760
  %289 = vmatpush1.msra.mxu0 %v288
  %290 = vmatprep.subr.mxu0 0.0
  %v291 = vand.u32 %v36, 4294901760
  %v292 = vsub.f32 %v36, %v291
  %v293 = vand.u32 %v292, 4294901760
  %v294 = vsub.f32 %v292, %v293
  %v295 = vand.u32 %v294, 4294901760
  %296 = vmatpush1.msra.mxu0 %v295
  %297 = vmatprep.subr.mxu0 0.0
  %v298 = vand.u32 %v35, 4294901760
  %v299 = vsub.f32 %v35, %v298
  %v300 = vand.u32 %v299, 4294901760
  %v301 = vsub.f32 %v299, %v300
  %v302 = vand.u32 %v301, 4294901760
  %303 = vmatpush1.msra.mxu0 %v302
  %304 = vmatprep.subr.mxu0 0.0
  %v305 = vand.u32 %v34, 4294901760
  %v306 = vsub.f32 %v34, %v305
  %v307 = vand.u32 %v306, 4294901760
  %v308 = vsub.f32 %v306, %v307
  %v309 = vand.u32 %v308, 4294901760
  %310 = vmatpush1.msra.mxu0 %v309
  %311 = vmatprep.subr.mxu0 0.0
  %v312 = vand.u32 %v33, 4294901760
  %v313 = vsub.f32 %v33, %v312
  %v314 = vand.u32 %v313, 4294901760
  %v315 = vsub.f32 %v313, %v314
  %v316 = vand.u32 %v315, 4294901760
  %317 = vmatpush1.msra.mxu0 %v316
  %318 = vmatprep.subr.mxu0 0.0
  %v319 = vand.u32 %v32, 4294901760
  %v320 = vsub.f32 %v32, %v319
  %v321 = vand.u32 %v320, 4294901760
  %v322 = vsub.f32 %v320, %v321
  %v323 = vand.u32 %v322, 4294901760
  %324 = vmatpush1.msra.mxu0 %v323
  %325 = vmatprep.subr.mxu0 0.0
  %v326 = vand.u32 %v31, 4294901760
  %v327 = vsub.f32 %v31, %v326
  %v328 = vand.u32 %v327, 4294901760
  %v329 = vsub.f32 %v327, %v328
  %v330 = vand.u32 %v329, 4294901760
  %331 = vmatpush1.msra.mxu0 %v330
  %332 = vmatprep.subr.mxu0 0.0
  %v333 = vand.u32 %v30, 4294901760
  %v334 = vsub.f32 %v30, %v333
  %v335 = vand.u32 %v334, 4294901760
  %v336 = vsub.f32 %v334, %v335
  %v337 = vand.u32 %v336, 4294901760
  %338 = vmatpush1.msra.mxu0 %v337
  %339 = vmatprep.subr.mxu0 0.0
  %v340 = vand.u32 %v29, 4294901760
  %v341 = vsub.f32 %v29, %v340
  %v342 = vand.u32 %v341, 4294901760
  %v343 = vsub.f32 %v341, %v342
  %v344 = vand.u32 %v343, 4294901760
  %345 = vmatpush1.msra.mxu0 %v344
  %346 = vmatprep.subr.mxu0 0.0
  %v347 = vand.u32 %v28, 4294901760
  %v348 = vsub.f32 %v28, %v347
  %v349 = vand.u32 %v348, 4294901760
  %v350 = vsub.f32 %v348, %v349
  %v351 = vand.u32 %v350, 4294901760
  %352 = vmatpush1.msra.mxu0 %v351
  %353 = vmatprep.subr.mxu0 0.0
  %v354 = vand.u32 %v27, 4294901760
  %v355 = vsub.f32 %v27, %v354
  %v356 = vand.u32 %v355, 4294901760
  %v357 = vsub.f32 %v355, %v356
  %v358 = vand.u32 %v357, 4294901760
  %359 = vmatpush1.msra.mxu0 %v358
  %360 = vmatprep.subr.mxu0 0.0
  %v361 = vand.u32 %v58, 4294901760
  %v362 = vsub.f32 %v58, %v361
  %v363 = vand.u32 %v362, 4294901760
  %v364 = vsub.f32 %v362, %v363
  %v365 = vand.u32 %v364, 4294901760
  %366 = vmatpush2.msra.mxu0 %v365
  %367 = vmatprep.subr.mxu0 0.0
  %v368 = vand.u32 %v57, 4294901760
  %v369 = vsub.f32 %v57, %v368
  %v370 = vand.u32 %v369, 4294901760
  %v371 = vsub.f32 %v369, %v370
  %v372 = vand.u32 %v371, 4294901760
  %373 = vmatpush2.msra.mxu0 %v372
  %374 = vmatprep.subr.mxu0 0.0
  %v375 = vand.u32 %v56, 4294901760
  %v376 = vsub.f32 %v56, %v375
  %v377 = vand.u32 %v376, 4294901760
  %v378 = vsub.f32 %v376, %v377
  %v379 = vand.u32 %v378, 4294901760
  %380 = vmatpush2.msra.mxu0 %v379
  %381 = vmatprep.subr.mxu0 0.0
  %v382 = vand.u32 %v55, 4294901760
  %v383 = vsub.f32 %v55, %v382
  %v384 = vand.u32 %v383, 4294901760
  %v385 = vsub.f32 %v383, %v384
  %v386 = vand.u32 %v385, 4294901760
  %387 = vmatpush2.msra.mxu0 %v386
  %388 = vmatprep.subr.mxu0 0.0
  %v389 = vand.u32 %v54, 4294901760
  %v390 = vsub.f32 %v54, %v389
  %v391 = vand.u32 %v390, 4294901760
  %v392 = vsub.f32 %v390, %v391
  %v393 = vand.u32 %v392, 4294901760
  %394 = vmatpush2.msra.mxu0 %v393
  %395 = vmatprep.subr.mxu0 0.0
  %v396 = vand.u32 %v53, 4294901760
  %v397 = vsub.f32 %v53, %v396
  %v398 = vand.u32 %v397, 4294901760
  %v399 = vsub.f32 %v397, %v398
  %v400 = vand.u32 %v399, 4294901760
  %401 = vmatpush2.msra.mxu0 %v400
  %402 = vmatprep.subr.mxu0 0.0
  %v403 = vand.u32 %v52, 4294901760
  %v404 = vsub.f32 %v52, %v403
  %v405 = vand.u32 %v404, 4294901760
  %v406 = vsub.f32 %v404, %v405
  %v407 = vand.u32 %v406, 4294901760
  %408 = vmatpush2.msra.mxu0 %v407
  %409 = vmatprep.subr.mxu0 0.0
  %v410 = vand.u32 %v51, 4294901760
  %v411 = vsub.f32 %v51, %v410
  %v412 = vand.u32 %v411, 4294901760
  %v413 = vsub.f32 %v411, %v412
  %v414 = vand.u32 %v413, 4294901760
  %415 = vmatpush2.msra.mxu0 %v414
  %416 = vmatprep.subr.mxu0 0.0
  %v417 = vand.u32 %v50, 4294901760
  %v418 = vsub.f32 %v50, %v417
  %v419 = vand.u32 %v418, 4294901760
  %v420 = vsub.f32 %v418, %v419
  %v421 = vand.u32 %v420, 4294901760
  %422 = vmatpush2.msra.mxu0 %v421
  %423 = vmatprep.subr.mxu0 0.0
  %v424 = vand.u32 %v49, 4294901760
  %v425 = vsub.f32 %v49, %v424
  %v426 = vand.u32 %v425, 4294901760
  %v427 = vsub.f32 %v425, %v426
  %v428 = vand.u32 %v427, 4294901760
  %429 = vmatpush2.msra.mxu0 %v428
  %430 = vmatprep.subr.mxu0 0.0
  %v431 = vand.u32 %v48, 4294901760
  %v432 = vsub.f32 %v48, %v431
  %v433 = vand.u32 %v432, 4294901760
  %v434 = vsub.f32 %v432, %v433
  %v435 = vand.u32 %v434, 4294901760
  %436 = vmatpush2.msra.mxu0 %v435
  %437 = vmatprep.subr.mxu0 0.0
  %v438 = vand.u32 %v47, 4294901760
  %v439 = vsub.f32 %v47, %v438
  %v440 = vand.u32 %v439, 4294901760
  %v441 = vsub.f32 %v439, %v440
  %v442 = vand.u32 %v441, 4294901760
  %443 = vmatpush2.msra.mxu0 %v442
  %444 = vmatprep.subr.mxu0 0.0
  %v445 = vand.u32 %v46, 4294901760
  %v446 = vsub.f32 %v46, %v445
  %v447 = vand.u32 %v446, 4294901760
  %v448 = vsub.f32 %v446, %v447
  %v449 = vand.u32 %v448, 4294901760
  %450 = vmatpush2.msra.mxu0 %v449
  %451 = vmatprep.subr.mxu0 0.0
  %v452 = vand.u32 %v45, 4294901760
  %v453 = vsub.f32 %v45, %v452
  %v454 = vand.u32 %v453, 4294901760
  %v455 = vsub.f32 %v453, %v454
  %v456 = vand.u32 %v455, 4294901760
  %457 = vmatpush2.msra.mxu0 %v456
  %458 = vmatprep.subr.mxu0 0.0
  %v459 = vand.u32 %v44, 4294901760
  %v460 = vsub.f32 %v44, %v459
  %v461 = vand.u32 %v460, 4294901760
  %v462 = vsub.f32 %v460, %v461
  %v463 = vand.u32 %v462, 4294901760
  %464 = vmatpush2.msra.mxu0 %v463
  %465 = vmatprep.subr.mxu0 0.0
  %v466 = vand.u32 %v43, 4294901760
  %v467 = vsub.f32 %v43, %v466
  %v468 = vand.u32 %v467, 4294901760
  %v469 = vsub.f32 %v467, %v468
  %v470 = vand.u32 %v469, 4294901760
  %471 = vmatpush2.msra.mxu0 %v470
  %v472 = vand.u32 %v12, 4294901760
  %473 = vmatprep.mubr.f32.mxu0 %v472
  %v474 = vand.u32 %v11, 4294901760
  %475 = vmatmul.mubr.f32.gmra.mxu0 %v474
  %v476 = vpop.f32.mrf.mxu0
  %v477 = vadd.f32 %v200, %v476
  %v478 = vpop.f32.mrf.mxu0
  %v479 = vand.u32 %v16, 4294901760
  %480 = vmatprep.mubr.f32.mxu0 %v479
  %v481 = vand.u32 %v15, 4294901760
  %482 = vmatmul.mubr.f32.gmra.mxu0 %v481
  %v483 = vpop.f32.mrf.mxu0
  %v484 = vadd.f32 %v215, %v483
  %v485 = vpop.f32.mrf.mxu0
  %v486 = vand.u32 %v20, 4294901760
  %487 = vmatprep.mubr.f32.mxu0 %v486
  %v488 = vand.u32 %v19, 4294901760
  %489 = vmatmul.mubr.f32.gmra.mxu0 %v488
  %v490 = vpop.f32.mrf.mxu0
  %v491 = vadd.f32 %v230, %v490
  %v492 = vpop.f32.mrf.mxu0
  %v493 = vand.u32 %v24, 4294901760
  %494 = vmatprep.mubr.f32.mxu0 %v493
  %v495 = vand.u32 %v23, 4294901760
  %496 = vmatmul.mubr.f32.gmra.mxu0 %v495
  %v497 = vpop.f32.mrf.mxu0
  %v498 = vadd.f32 %v245, %v497
  %v499 = vpop.f32.mrf.mxu0
  %500 = vdwg.mxu0
  %501 = vmatprep.subr.mxu0 0.0
  %v502 = vand.u32 %v42, 4294901760
  %v503 = vsub.f32 %v42, %v502
  %504 = vmatpush1.msra.mxu0 %v503
  %505 = vmatprep.subr.mxu0 0.0
  %v506 = vand.u32 %v41, 4294901760
  %v507 = vsub.f32 %v41, %v506
  %508 = vmatpush1.msra.mxu0 %v507
  %509 = vmatprep.subr.mxu0 0.0
  %v510 = vand.u32 %v40, 4294901760
  %v511 = vsub.f32 %v40, %v510
  %512 = vmatpush1.msra.mxu0 %v511
  %513 = vmatprep.subr.mxu0 0.0
  %v514 = vand.u32 %v39, 4294901760
  %v515 = vsub.f32 %v39, %v514
  %516 = vmatpush1.msra.mxu0 %v515
  %517 = vmatprep.subr.mxu0 0.0
  %v518 = vand.u32 %v38, 4294901760
  %v519 = vsub.f32 %v38, %v518
  %520 = vmatpush1.msra.mxu0 %v519
  %521 = vmatprep.subr.mxu0 0.0
  %v522 = vand.u32 %v37, 4294901760
  %v523 = vsub.f32 %v37, %v522
  %524 = vmatpush1.msra.mxu0 %v523
  %525 = vmatprep.subr.mxu0 0.0
  %v526 = vand.u32 %v36, 4294901760
  %v527 = vsub.f32 %v36, %v526
  %528 = vmatpush1.msra.mxu0 %v527
  %529 = vmatprep.subr.mxu0 0.0
  %v530 = vand.u32 %v35, 4294901760
  %v531 = vsub.f32 %v35, %v530
  %532 = vmatpush1.msra.mxu0 %v531
  %533 = vmatprep.subr.mxu0 0.0
  %v534 = vand.u32 %v34, 4294901760
  %v535 = vsub.f32 %v34, %v534
  %536 = vmatpush1.msra.mxu0 %v535
  %537 = vmatprep.subr.mxu0 0.0
  %v538 = vand.u32 %v33, 4294901760
  %v539 = vsub.f32 %v33, %v538
  %540 = vmatpush1.msra.mxu0 %v539
  %541 = vmatprep.subr.mxu0 0.0
  %v542 = vand.u32 %v32, 4294901760
  %v543 = vsub.f32 %v32, %v542
  %544 = vmatpush1.msra.mxu0 %v543
  %545 = vmatprep.subr.mxu0 0.0
  %v546 = vand.u32 %v31, 4294901760
  %v547 = vsub.f32 %v31, %v546
  %548 = vmatpush1.msra.mxu0 %v547
  %549 = vmatprep.subr.mxu0 0.0
  %v550 = vand.u32 %v30, 4294901760
  %v551 = vsub.f32 %v30, %v550
  %552 = vmatpush1.msra.mxu0 %v551
  %553 = vmatprep.subr.mxu0 0.0
  %v554 = vand.u32 %v29, 4294901760
  %v555 = vsub.f32 %v29, %v554
  %556 = vmatpush1.msra.mxu0 %v555
  %557 = vmatprep.subr.mxu0 0.0
  %v558 = vand.u32 %v28, 4294901760
  %v559 = vsub.f32 %v28, %v558
  %560 = vmatpush1.msra.mxu0 %v559
  %561 = vmatprep.subr.mxu0 0.0
  %v562 = vand.u32 %v27, 4294901760
  %v563 = vsub.f32 %v27, %v562
  %564 = vmatpush1.msra.mxu0 %v563
  %565 = vmatprep.subr.mxu0 0.0
  %v566 = vand.u32 %v58, 4294901760
  %v567 = vsub.f32 %v58, %v566
  %568 = vmatpush2.msra.mxu0 %v567
  %569 = vmatprep.subr.mxu0 0.0
  %v570 = vand.u32 %v57, 4294901760
  %v571 = vsub.f32 %v57, %v570
  %572 = vmatpush2.msra.mxu0 %v571
  %573 = vmatprep.subr.mxu0 0.0
  %v574 = vand.u32 %v56, 4294901760
  %v575 = vsub.f32 %v56, %v574
  %576 = vmatpush2.msra.mxu0 %v575
  %577 = vmatprep.subr.mxu0 0.0
  %v578 = vand.u32 %v55, 4294901760
  %v579 = vsub.f32 %v55, %v578
  %580 = vmatpush2.msra.mxu0 %v579
  %581 = vmatprep.subr.mxu0 0.0
  %v582 = vand.u32 %v54, 4294901760
  %v583 = vsub.f32 %v54, %v582
  %584 = vmatpush2.msra.mxu0 %v583
  %585 = vmatprep.subr.mxu0 0.0
  %v586 = vand.u32 %v53, 4294901760
  %v587 = vsub.f32 %v53, %v586
  %588 = vmatpush2.msra.mxu0 %v587
  %589 = vmatprep.subr.mxu0 0.0
  %v590 = vand.u32 %v52, 4294901760
  %v591 = vsub.f32 %v52, %v590
  %592 = vmatpush2.msra.mxu0 %v591
  %593 = vmatprep.subr.mxu0 0.0
  %v594 = vand.u32 %v51, 4294901760
  %v595 = vsub.f32 %v51, %v594
  %596 = vmatpush2.msra.mxu0 %v595
  %597 = vmatprep.subr.mxu0 0.0
  %v598 = vand.u32 %v50, 4294901760
  %v599 = vsub.f32 %v50, %v598
  %600 = vmatpush2.msra.mxu0 %v599
  %601 = vmatprep.subr.mxu0 0.0
  %v602 = vand.u32 %v49, 4294901760
  %v603 = vsub.f32 %v49, %v602
  %604 = vmatpush2.msra.mxu0 %v603
  %605 = vmatprep.subr.mxu0 0.0
  %v606 = vand.u32 %v48, 4294901760
  %v607 = vsub.f32 %v48, %v606
  %608 = vmatpush2.msra.mxu0 %v607
  %609 = vmatprep.subr.mxu0 0.0
  %v610 = vand.u32 %v47, 4294901760
  %v611 = vsub.f32 %v47, %v610
  %612 = vmatpush2.msra.mxu0 %v611
  %613 = vmatprep.subr.mxu0 0.0
  %v614 = vand.u32 %v46, 4294901760
  %v615 = vsub.f32 %v46, %v614
  %616 = vmatpush2.msra.mxu0 %v615
  %617 = vmatprep.subr.mxu0 0.0
  %v618 = vand.u32 %v45, 4294901760
  %v619 = vsub.f32 %v45, %v618
  %620 = vmatpush2.msra.mxu0 %v619
  %621 = vmatprep.subr.mxu0 0.0
  %v622 = vand.u32 %v44, 4294901760
  %v623 = vsub.f32 %v44, %v622
  %624 = vmatpush2.msra.mxu0 %v623
  %625 = vmatprep.subr.mxu0 0.0
  %v626 = vand.u32 %v43, 4294901760
  %v627 = vsub.f32 %v43, %v626
  %628 = vmatpush2.msra.mxu0 %v627
  %v629 = vand.u32 %v12, 4294901760
  %v630 = vsub.f32 %v12, %v629
  %631 = vmatprep.mubr.f32.mxu0 %v630
  %v632 = vand.u32 %v11, 4294901760
  %v633 = vsub.f32 %v11, %v632
  %634 = vmatmul.mubr.f32.gmra.mxu0 %v633
  %v635 = vpop.f32.mrf.mxu0
  %v636 = vadd.f32 %v477, %v635
  %v637 = vpop.f32.mrf.mxu0
  %v638 = vand.u32 %v16, 4294901760
  %v639 = vsub.f32 %v16, %v638
  %640 = vmatprep.mubr.f32.mxu0 %v639
  %v641 = vand.u32 %v15, 4294901760
  %v642 = vsub.f32 %v15, %v641
  %643 = vmatmul.mubr.f32.gmra.mxu0 %v642
  %v644 = vpop.f32.mrf.mxu0
  %v645 = vadd.f32 %v484, %v644
  %v646 = vpop.f32.mrf.mxu0
  %v647 = vand.u32 %v20, 4294901760
  %v648 = vsub.f32 %v20, %v647
  %649 = vmatprep.mubr.f32.mxu0 %v648
  %v650 = vand.u32 %v19, 4294901760
  %v651 = vsub.f32 %v19, %v650
  %652 = vmatmul.mubr.f32.gmra.mxu0 %v651
  %v653 = vpop.f32.mrf.mxu0
  %v654 = vadd.f32 %v491, %v653
  %v655 = vpop.f32.mrf.mxu0
  %v656 = vand.u32 %v24, 4294901760
  %v657 = vsub.f32 %v24, %v656
  %658 = vmatprep.mubr.f32.mxu0 %v657
  %v659 = vand.u32 %v23, 4294901760
  %v660 = vsub.f32 %v23, %v659
  %661 = vmatmul.mubr.f32.gmra.mxu0 %v660
  %v662 = vpop.f32.mrf.mxu0
  %v663 = vadd.f32 %v498, %v662
  %v664 = vpop.f32.mrf.mxu0
  %665 = vdwg.mxu0
  %666 = vmatprep.subr.mxu0 0.0
  %v667 = vand.u32 %v42, 4294901760
  %668 = vmatpush1.msra.mxu0 %v667
  %669 = vmatprep.subr.mxu0 0.0
  %v670 = vand.u32 %v41, 4294901760
  %671 = vmatpush1.msra.mxu0 %v670
  %672 = vmatprep.subr.mxu0 0.0
  %v673 = vand.u32 %v40, 4294901760
  %674 = vmatpush1.msra.mxu0 %v673
  %675 = vmatprep.subr.mxu0 0.0
  %v676 = vand.u32 %v39, 4294901760
  %677 = vmatpush1.msra.mxu0 %v676
  %678 = vmatprep.subr.mxu0 0.0
  %v679 = vand.u32 %v38, 4294901760
  %680 = vmatpush1.msra.mxu0 %v679
  %681 = vmatprep.subr.mxu0 0.0
  %v682 = vand.u32 %v37, 4294901760
  %683 = vmatpush1.msra.mxu0 %v682
  %684 = vmatprep.subr.mxu0 0.0
  %v685 = vand.u32 %v36, 4294901760
  %686 = vmatpush1.msra.mxu0 %v685
  %687 = vmatprep.subr.mxu0 0.0
  %v688 = vand.u32 %v35, 4294901760
  %689 = vmatpush1.msra.mxu0 %v688
  %690 = vmatprep.subr.mxu0 0.0
  %v691 = vand.u32 %v34, 4294901760
  %692 = vmatpush1.msra.mxu0 %v691
  %693 = vmatprep.subr.mxu0 0.0
  %v694 = vand.u32 %v33, 4294901760
  %695 = vmatpush1.msra.mxu0 %v694
  %696 = vmatprep.subr.mxu0 0.0
  %v697 = vand.u32 %v32, 4294901760
  %698 = vmatpush1.msra.mxu0 %v697
  %699 = vmatprep.subr.mxu0 0.0
  %v700 = vand.u32 %v31, 4294901760
  %701 = vmatpush1.msra.mxu0 %v700
  %702 = vmatprep.subr.mxu0 0.0
  %v703 = vand.u32 %v30, 4294901760
  %704 = vmatpush1.msra.mxu0 %v703
  %705 = vmatprep.subr.mxu0 0.0
  %v706 = vand.u32 %v29, 4294901760
  %707 = vmatpush1.msra.mxu0 %v706
  %708 = vmatprep.subr.mxu0 0.0
  %v709 = vand.u32 %v28, 4294901760
  %710 = vmatpush1.msra.mxu0 %v709
  %711 = vmatprep.subr.mxu0 0.0
  %v712 = vand.u32 %v27, 4294901760
  %713 = vmatpush1.msra.mxu0 %v712
  %714 = vmatprep.subr.mxu0 0.0
  %v715 = vand.u32 %v58, 4294901760
  %716 = vmatpush2.msra.mxu0 %v715
  %717 = vmatprep.subr.mxu0 0.0
  %v718 = vand.u32 %v57, 4294901760
  %719 = vmatpush2.msra.mxu0 %v718
  %720 = vmatprep.subr.mxu0 0.0
  %v721 = vand.u32 %v56, 4294901760
  %722 = vmatpush2.msra.mxu0 %v721
  %723 = vmatprep.subr.mxu0 0.0
  %v724 = vand.u32 %v55, 4294901760
  %725 = vmatpush2.msra.mxu0 %v724
  %726 = vmatprep.subr.mxu0 0.0
  %v727 = vand.u32 %v54, 4294901760
  %728 = vmatpush2.msra.mxu0 %v727
  %729 = vmatprep.subr.mxu0 0.0
  %v730 = vand.u32 %v53, 4294901760
  %731 = vmatpush2.msra.mxu0 %v730
  %732 = vmatprep.subr.mxu0 0.0
  %v733 = vand.u32 %v52, 4294901760
  %734 = vmatpush2.msra.mxu0 %v733
  %735 = vmatprep.subr.mxu0 0.0
  %v736 = vand.u32 %v51, 4294901760
  %737 = vmatpush2.msra.mxu0 %v736
  %738 = vmatprep.subr.mxu0 0.0
  %v739 = vand.u32 %v50, 4294901760
  %740 = vmatpush2.msra.mxu0 %v739
  %741 = vmatprep.subr.mxu0 0.0
  %v742 = vand.u32 %v49, 4294901760
  %743 = vmatpush2.msra.mxu0 %v742
  %744 = vmatprep.subr.mxu0 0.0
  %v745 = vand.u32 %v48, 4294901760
  %746 = vmatpush2.msra.mxu0 %v745
  %747 = vmatprep.subr.mxu0 0.0
  %v748 = vand.u32 %v47, 4294901760
  %749 = vmatpush2.msra.mxu0 %v748
  %750 = vmatprep.subr.mxu0 0.0
  %v751 = vand.u32 %v46, 4294901760
  %752 = vmatpush2.msra.mxu0 %v751
  %753 = vmatprep.subr.mxu0 0.0
  %v754 = vand.u32 %v45, 4294901760
  %755 = vmatpush2.msra.mxu0 %v754
  %756 = vmatprep.subr.mxu0 0.0
  %v757 = vand.u32 %v44, 4294901760
  %758 = vmatpush2.msra.mxu0 %v757
  %759 = vmatprep.subr.mxu0 0.0
  %v760 = vand.u32 %v43, 4294901760
  %761 = vmatpush2.msra.mxu0 %v760
  %v762 = vand.u32 %v12, 4294901760
  %v763 = vsub.f32 %v12, %v762
  %v764 = vand.u32 %v763, 4294901760
  %765 = vmatprep.mubr.f32.mxu0 %v764
  %v766 = vand.u32 %v11, 4294901760
  %v767 = vsub.f32 %v11, %v766
  %v768 = vand.u32 %v767, 4294901760
  %769 = vmatmul.mubr.f32.gmra.mxu0 %v768
  %v770 = vpop.f32.mrf.mxu0
  %v771 = vadd.f32 %v636, %v770
  %v772 = vpop.f32.mrf.mxu0
  %v773 = vand.u32 %v16, 4294901760
  %v774 = vsub.f32 %v16, %v773
  %v775 = vand.u32 %v774, 4294901760
  %776 = vmatprep.mubr.f32.mxu0 %v775
  %v777 = vand.u32 %v15, 4294901760
  %v778 = vsub.f32 %v15, %v777
  %v779 = vand.u32 %v778, 4294901760
  %780 = vmatmul.mubr.f32.gmra.mxu0 %v779
  %v781 = vpop.f32.mrf.mxu0
  %v782 = vadd.f32 %v645, %v781
  %v783 = vpop.f32.mrf.mxu0
  %v784 = vand.u32 %v20, 4294901760
  %v785 = vsub.f32 %v20, %v784
  %v786 = vand.u32 %v785, 4294901760
  %787 = vmatprep.mubr.f32.mxu0 %v786
  %v788 = vand.u32 %v19, 4294901760
  %v789 = vsub.f32 %v19, %v788
  %v790 = vand.u32 %v789, 4294901760
  %791 = vmatmul.mubr.f32.gmra.mxu0 %v790
  %v792 = vpop.f32.mrf.mxu0
  %v793 = vadd.f32 %v654, %v792
  %v794 = vpop.f32.mrf.mxu0
  %v795 = vand.u32 %v24, 4294901760
  %v796 = vsub.f32 %v24, %v795
  %v797 = vand.u32 %v796, 4294901760
  %798 = vmatprep.mubr.f32.mxu0 %v797
  %v799 = vand.u32 %v23, 4294901760
  %v800 = vsub.f32 %v23, %v799
  %v801 = vand.u32 %v800, 4294901760
  %802 = vmatmul.mubr.f32.gmra.mxu0 %v801
  %v803 = vpop.f32.mrf.mxu0
  %v804 = vadd.f32 %v663, %v803
  %v805 = vpop.f32.mrf.mxu0
  %806 = vdwg.mxu0
  %807 = vmatprep.subr.mxu0 0.0
  %v808 = vand.u32 %v42, 4294901760
  %v809 = vsub.f32 %v42, %v808
  %v810 = vand.u32 %v809, 4294901760
  %811 = vmatpush1.msra.mxu0 %v810
  %812 = vmatprep.subr.mxu0 0.0
  %v813 = vand.u32 %v41, 4294901760
  %v814 = vsub.f32 %v41, %v813
  %v815 = vand.u32 %v814, 4294901760
  %816 = vmatpush1.msra.mxu0 %v815
  %817 = vmatprep.subr.mxu0 0.0
  %v818 = vand.u32 %v40, 4294901760
  %v819 = vsub.f32 %v40, %v818
  %v820 = vand.u32 %v819, 4294901760
  %821 = vmatpush1.msra.mxu0 %v820
  %822 = vmatprep.subr.mxu0 0.0
  %v823 = vand.u32 %v39, 4294901760
  %v824 = vsub.f32 %v39, %v823
  %v825 = vand.u32 %v824, 4294901760
  %826 = vmatpush1.msra.mxu0 %v825
  %827 = vmatprep.subr.mxu0 0.0
  %v828 = vand.u32 %v38, 4294901760
  %v829 = vsub.f32 %v38, %v828
  %v830 = vand.u32 %v829, 4294901760
  %831 = vmatpush1.msra.mxu0 %v830
  %832 = vmatprep.subr.mxu0 0.0
  %v833 = vand.u32 %v37, 4294901760
  %v834 = vsub.f32 %v37, %v833
  %v835 = vand.u32 %v834, 4294901760
  %836 = vmatpush1.msra.mxu0 %v835
  %837 = vmatprep.subr.mxu0 0.0
  %v838 = vand.u32 %v36, 4294901760
  %v839 = vsub.f32 %v36, %v838
  %v840 = vand.u32 %v839, 4294901760
  %841 = vmatpush1.msra.mxu0 %v840
  %842 = vmatprep.subr.mxu0 0.0
  %v843 = vand.u32 %v35, 4294901760
  %v844 = vsub.f32 %v35, %v843
  %v845 = vand.u32 %v844, 4294901760
  %846 = vmatpush1.msra.mxu0 %v845
  %847 = vmatprep.subr.mxu0 0.0
  %v848 = vand.u32 %v34, 4294901760
  %v849 = vsub.f32 %v34, %v848
  %v850 = vand.u32 %v849, 4294901760
  %851 = vmatpush1.msra.mxu0 %v850
  %852 = vmatprep.subr.mxu0 0.0
  %v853 = vand.u32 %v33, 4294901760
  %v854 = vsub.f32 %v33, %v853
  %v855 = vand.u32 %v854, 4294901760
  %856 = vmatpush1.msra.mxu0 %v855
  %857 = vmatprep.subr.mxu0 0.0
  %v858 = vand.u32 %v32, 4294901760
  %v859 = vsub.f32 %v32, %v858
  %v860 = vand.u32 %v859, 4294901760
  %861 = vmatpush1.msra.mxu0 %v860
  %862 = vmatprep.subr.mxu0 0.0
  %v863 = vand.u32 %v31, 4294901760
  %v864 = vsub.f32 %v31, %v863
  %v865 = vand.u32 %v864, 4294901760
  %866 = vmatpush1.msra.mxu0 %v865
  %867 = vmatprep.subr.mxu0 0.0
  %v868 = vand.u32 %v30, 4294901760
  %v869 = vsub.f32 %v30, %v868
  %v870 = vand.u32 %v869, 4294901760
  %871 = vmatpush1.msra.mxu0 %v870
  %872 = vmatprep.subr.mxu0 0.0
  %v873 = vand.u32 %v29, 4294901760
  %v874 = vsub.f32 %v29, %v873
  %v875 = vand.u32 %v874, 4294901760
  %876 = vmatpush1.msra.mxu0 %v875
  %877 = vmatprep.subr.mxu0 0.0
  %v878 = vand.u32 %v28, 4294901760
  %v879 = vsub.f32 %v28, %v878
  %v880 = vand.u32 %v879, 4294901760
  %881 = vmatpush1.msra.mxu0 %v880
  %882 = vmatprep.subr.mxu0 0.0
  %v883 = vand.u32 %v27, 4294901760
  %v884 = vsub.f32 %v27, %v883
  %v885 = vand.u32 %v884, 4294901760
  %886 = vmatpush1.msra.mxu0 %v885
  %887 = vmatprep.subr.mxu0 0.0
  %v888 = vand.u32 %v58, 4294901760
  %v889 = vsub.f32 %v58, %v888
  %v890 = vand.u32 %v889, 4294901760
  %891 = vmatpush2.msra.mxu0 %v890
  %892 = vmatprep.subr.mxu0 0.0
  %v893 = vand.u32 %v57, 4294901760
  %v894 = vsub.f32 %v57, %v893
  %v895 = vand.u32 %v894, 4294901760
  %896 = vmatpush2.msra.mxu0 %v895
  %897 = vmatprep.subr.mxu0 0.0
  %v898 = vand.u32 %v56, 4294901760
  %v899 = vsub.f32 %v56, %v898
  %v900 = vand.u32 %v899, 4294901760
  %901 = vmatpush2.msra.mxu0 %v900
  %902 = vmatprep.subr.mxu0 0.0
  %v903 = vand.u32 %v55, 4294901760
  %v904 = vsub.f32 %v55, %v903
  %v905 = vand.u32 %v904, 4294901760
  %906 = vmatpush2.msra.mxu0 %v905
  %907 = vmatprep.subr.mxu0 0.0
  %v908 = vand.u32 %v54, 4294901760
  %v909 = vsub.f32 %v54, %v908
  %v910 = vand.u32 %v909, 4294901760
  %911 = vmatpush2.msra.mxu0 %v910
  %912 = vmatprep.subr.mxu0 0.0
  %v913 = vand.u32 %v53, 4294901760
  %v914 = vsub.f32 %v53, %v913
  %v915 = vand.u32 %v914, 4294901760
  %916 = vmatpush2.msra.mxu0 %v915
  %917 = vmatprep.subr.mxu0 0.0
  %v918 = vand.u32 %v52, 4294901760
  %v919 = vsub.f32 %v52, %v918
  %v920 = vand.u32 %v919, 4294901760
  %921 = vmatpush2.msra.mxu0 %v920
  %922 = vmatprep.subr.mxu0 0.0
  %v923 = vand.u32 %v51, 4294901760
  %v924 = vsub.f32 %v51, %v923
  %v925 = vand.u32 %v924, 4294901760
  %926 = vmatpush2.msra.mxu0 %v925
  %927 = vmatprep.subr.mxu0 0.0
  %v928 = vand.u32 %v50, 4294901760
  %v929 = vsub.f32 %v50, %v928
  %v930 = vand.u32 %v929, 4294901760
  %931 = vmatpush2.msra.mxu0 %v930
  %932 = vmatprep.subr.mxu0 0.0
  %v933 = vand.u32 %v49, 4294901760
  %v934 = vsub.f32 %v49, %v933
  %v935 = vand.u32 %v934, 4294901760
  %936 = vmatpush2.msra.mxu0 %v935
  %937 = vmatprep.subr.mxu0 0.0
  %v938 = vand.u32 %v48, 4294901760
  %v939 = vsub.f32 %v48, %v938
  %v940 = vand.u32 %v939, 4294901760
  %941 = vmatpush2.msra.mxu0 %v940
  %942 = vmatprep.subr.mxu0 0.0
  %v943 = vand.u32 %v47, 4294901760
  %v944 = vsub.f32 %v47, %v943
  %v945 = vand.u32 %v944, 4294901760
  %946 = vmatpush2.msra.mxu0 %v945
  %947 = vmatprep.subr.mxu0 0.0
  %v948 = vand.u32 %v46, 4294901760
  %v949 = vsub.f32 %v46, %v948
  %v950 = vand.u32 %v949, 4294901760
  %951 = vmatpush2.msra.mxu0 %v950
  %952 = vmatprep.subr.mxu0 0.0
  %v953 = vand.u32 %v45, 4294901760
  %v954 = vsub.f32 %v45, %v953
  %v955 = vand.u32 %v954, 4294901760
  %956 = vmatpush2.msra.mxu0 %v955
  %957 = vmatprep.subr.mxu0 0.0
  %v958 = vand.u32 %v44, 4294901760
  %v959 = vsub.f32 %v44, %v958
  %v960 = vand.u32 %v959, 4294901760
  %961 = vmatpush2.msra.mxu0 %v960
  %962 = vmatprep.subr.mxu0 0.0
  %v963 = vand.u32 %v43, 4294901760
  %v964 = vsub.f32 %v43, %v963
  %v965 = vand.u32 %v964, 4294901760
  %966 = vmatpush2.msra.mxu0 %v965
  %v967 = vand.u32 %v12, 4294901760
  %968 = vmatprep.mubr.f32.mxu0 %v967
  %v969 = vand.u32 %v11, 4294901760
  %970 = vmatmul.mubr.f32.gmra.mxu0 %v969
  %v971 = vpop.f32.mrf.mxu0
  %v972 = vadd.f32 %v771, %v971
  %v973 = vpop.f32.mrf.mxu0
  %v974 = vand.u32 %v16, 4294901760
  %975 = vmatprep.mubr.f32.mxu0 %v974
  %v976 = vand.u32 %v15, 4294901760
  %977 = vmatmul.mubr.f32.gmra.mxu0 %v976
  %v978 = vpop.f32.mrf.mxu0
  %v979 = vadd.f32 %v782, %v978
  %v980 = vpop.f32.mrf.mxu0
  %v981 = vand.u32 %v20, 4294901760
  %982 = vmatprep.mubr.f32.mxu0 %v981
  %v983 = vand.u32 %v19, 4294901760
  %984 = vmatmul.mubr.f32.gmra.mxu0 %v983
  %v985 = vpop.f32.mrf.mxu0
  %v986 = vadd.f32 %v793, %v985
  %v987 = vpop.f32.mrf.mxu0
  %v988 = vand.u32 %v24, 4294901760
  %989 = vmatprep.mubr.f32.mxu0 %v988
  %v990 = vand.u32 %v23, 4294901760
  %991 = vmatmul.mubr.f32.gmra.mxu0 %v990
  %v992 = vpop.f32.mrf.mxu0
  %v993 = vadd.f32 %v804, %v992
  %v994 = vpop.f32.mrf.mxu0
  %995 = vdwg.mxu0
  %996 = vmatprep.subr.mxu0 0.0
  %v997 = vand.u32 %v42, 4294901760
  %998 = vmatpush1.msra.mxu0 %v997
  %999 = vmatprep.subr.mxu0 0.0
  %v1000 = vand.u32 %v41, 4294901760
  %1001 = vmatpush1.msra.mxu0 %v1000
  %1002 = vmatprep.subr.mxu0 0.0
  %v1003 = vand.u32 %v40, 4294901760
  %1004 = vmatpush1.msra.mxu0 %v1003
  %1005 = vmatprep.subr.mxu0 0.0
  %v1006 = vand.u32 %v39, 4294901760
  %1007 = vmatpush1.msra.mxu0 %v1006
  %1008 = vmatprep.subr.mxu0 0.0
  %v1009 = vand.u32 %v38, 4294901760
  %1010 = vmatpush1.msra.mxu0 %v1009
  %1011 = vmatprep.subr.mxu0 0.0
  %v1012 = vand.u32 %v37, 4294901760
  %1013 = vmatpush1.msra.mxu0 %v1012
  %1014 = vmatprep.subr.mxu0 0.0
  %v1015 = vand.u32 %v36, 4294901760
  %1016 = vmatpush1.msra.mxu0 %v1015
  %1017 = vmatprep.subr.mxu0 0.0
  %v1018 = vand.u32 %v35, 4294901760
  %1019 = vmatpush1.msra.mxu0 %v1018
  %1020 = vmatprep.subr.mxu0 0.0
  %v1021 = vand.u32 %v34, 4294901760
  %1022 = vmatpush1.msra.mxu0 %v1021
  %1023 = vmatprep.subr.mxu0 0.0
  %v1024 = vand.u32 %v33, 4294901760
  %1025 = vmatpush1.msra.mxu0 %v1024
  %1026 = vmatprep.subr.mxu0 0.0
  %v1027 = vand.u32 %v32, 4294901760
  %1028 = vmatpush1.msra.mxu0 %v1027
  %1029 = vmatprep.subr.mxu0 0.0
  %v1030 = vand.u32 %v31, 4294901760
  %1031 = vmatpush1.msra.mxu0 %v1030
  %1032 = vmatprep.subr.mxu0 0.0
  %v1033 = vand.u32 %v30, 4294901760
  %1034 = vmatpush1.msra.mxu0 %v1033
  %1035 = vmatprep.subr.mxu0 0.0
  %v1036 = vand.u32 %v29, 4294901760
  %1037 = vmatpush1.msra.mxu0 %v1036
  %1038 = vmatprep.subr.mxu0 0.0
  %v1039 = vand.u32 %v28, 4294901760
  %1040 = vmatpush1.msra.mxu0 %v1039
  %1041 = vmatprep.subr.mxu0 0.0
  %v1042 = vand.u32 %v27, 4294901760
  %1043 = vmatpush1.msra.mxu0 %v1042
  %1044 = vmatprep.subr.mxu0 0.0
  %v1045 = vand.u32 %v58, 4294901760
  %1046 = vmatpush2.msra.mxu0 %v1045
  %1047 = vmatprep.subr.mxu0 0.0
  %v1048 = vand.u32 %v57, 4294901760
  %1049 = vmatpush2.msra.mxu0 %v1048
  %1050 = vmatprep.subr.mxu0 0.0
  %v1051 = vand.u32 %v56, 4294901760
  %1052 = vmatpush2.msra.mxu0 %v1051
  %1053 = vmatprep.subr.mxu0 0.0
  %v1054 = vand.u32 %v55, 4294901760
  %1055 = vmatpush2.msra.mxu0 %v1054
  %1056 = vmatprep.subr.mxu0 0.0
  %v1057 = vand.u32 %v54, 4294901760
  %1058 = vmatpush2.msra.mxu0 %v1057
  %1059 = vmatprep.subr.mxu0 0.0
  %v1060 = vand.u32 %v53, 4294901760
  %1061 = vmatpush2.msra.mxu0 %v1060
  %1062 = vmatprep.subr.mxu0 0.0
  %v1063 = vand.u32 %v52, 4294901760
  %1064 = vmatpush2.msra.mxu0 %v1063
  %1065 = vmatprep.subr.mxu0 0.0
  %v1066 = vand.u32 %v51, 4294901760
  %1067 = vmatpush2.msra.mxu0 %v1066
  %1068 = vmatprep.subr.mxu0 0.0
  %v1069 = vand.u32 %v50, 4294901760
  %1070 = vmatpush2.msra.mxu0 %v1069
  %1071 = vmatprep.subr.mxu0 0.0
  %v1072 = vand.u32 %v49, 4294901760
  %1073 = vmatpush2.msra.mxu0 %v1072
  %1074 = vmatprep.subr.mxu0 0.0
  %v1075 = vand.u32 %v48, 4294901760
  %1076 = vmatpush2.msra.mxu0 %v1075
  %1077 = vmatprep.subr.mxu0 0.0
  %v1078 = vand.u32 %v47, 4294901760
  %1079 = vmatpush2.msra.mxu0 %v1078
  %1080 = vmatprep.subr.mxu0 0.0
  %v1081 = vand.u32 %v46, 4294901760
  %1082 = vmatpush2.msra.mxu0 %v1081
  %1083 = vmatprep.subr.mxu0 0.0
  %v1084 = vand.u32 %v45, 4294901760
  %1085 = vmatpush2.msra.mxu0 %v1084
  %1086 = vmatprep.subr.mxu0 0.0
  %v1087 = vand.u32 %v44, 4294901760
  %1088 = vmatpush2.msra.mxu0 %v1087
  %1089 = vmatprep.subr.mxu0 0.0
  %v1090 = vand.u32 %v43, 4294901760
  %1091 = vmatpush2.msra.mxu0 %v1090
  %v1092 = vand.u32 %v12, 4294901760
  %1093 = vmatprep.mubr.f32.mxu0 %v1092
  %v1094 = vand.u32 %v11, 4294901760
  %1095 = vmatmul.mubr.f32.gmra.mxu0 %v1094
  %v1096 = vpop.f32.mrf.mxu0
  %v1097 = vadd.f32 %v972, %v1096
  %v1098 = vpop.f32.mrf.mxu0
  %v1099 = vand.u32 %v16, 4294901760
  %1100 = vmatprep.mubr.f32.mxu0 %v1099
  %v1101 = vand.u32 %v15, 4294901760
  %1102 = vmatmul.mubr.f32.gmra.mxu0 %v1101
  %v1103 = vpop.f32.mrf.mxu0
  %v1104 = vadd.f32 %v979, %v1103
  %v1105 = vpop.f32.mrf.mxu0
  %v1106 = vand.u32 %v20, 4294901760
  %1107 = vmatprep.mubr.f32.mxu0 %v1106
  %v1108 = vand.u32 %v19, 4294901760
  %1109 = vmatmul.mubr.f32.gmra.mxu0 %v1108
  %v1110 = vpop.f32.mrf.mxu0
  %v1111 = vadd.f32 %v986, %v1110
  %v1112 = vpop.f32.mrf.mxu0
  %v1113 = vand.u32 %v24, 4294901760
  %1114 = vmatprep.mubr.f32.mxu0 %v1113
  %v1115 = vand.u32 %v23, 4294901760
  %1116 = vmatmul.mubr.f32.gmra.mxu0 %v1115
  %v1117 = vpop.f32.mrf.mxu0
  %v1118 = vadd.f32 %v993, %v1117
  %v1119 = vpop.f32.mrf.mxu0
  %1120 = vdwg.mxu0
  %1121 = vmatprep.subr.mxu0 0.0
  %v1122 = vand.u32 %v74, 4294901760
  %1123 = vmatpush1.msra.mxu0 %v1122
  %1124 = vmatprep.subr.mxu0 0.0
  %v1125 = vand.u32 %v73, 4294901760
  %1126 = vmatpush1.msra.mxu0 %v1125
  %1127 = vmatprep.subr.mxu0 0.0
  %v1128 = vand.u32 %v72, 4294901760
  %1129 = vmatpush1.msra.mxu0 %v1128
  %1130 = vmatprep.subr.mxu0 0.0
  %v1131 = vand.u32 %v71, 4294901760
  %1132 = vmatpush1.msra.mxu0 %v1131
  %1133 = vmatprep.subr.mxu0 0.0
  %v1134 = vand.u32 %v70, 4294901760
  %1135 = vmatpush1.msra.mxu0 %v1134
  %1136 = vmatprep.subr.mxu0 0.0
  %v1137 = vand.u32 %v69, 4294901760
  %1138 = vmatpush1.msra.mxu0 %v1137
  %1139 = vmatprep.subr.mxu0 0.0
  %v1140 = vand.u32 %v68, 4294901760
  %1141 = vmatpush1.msra.mxu0 %v1140
  %1142 = vmatprep.subr.mxu0 0.0
  %v1143 = vand.u32 %v67, 4294901760
  %1144 = vmatpush1.msra.mxu0 %v1143
  %1145 = vmatprep.subr.mxu0 0.0
  %v1146 = vand.u32 %v66, 4294901760
  %1147 = vmatpush1.msra.mxu0 %v1146
  %1148 = vmatprep.subr.mxu0 0.0
  %v1149 = vand.u32 %v65, 4294901760
  %1150 = vmatpush1.msra.mxu0 %v1149
  %1151 = vmatprep.subr.mxu0 0.0
  %v1152 = vand.u32 %v64, 4294901760
  %1153 = vmatpush1.msra.mxu0 %v1152
  %1154 = vmatprep.subr.mxu0 0.0
  %v1155 = vand.u32 %v63, 4294901760
  %1156 = vmatpush1.msra.mxu0 %v1155
  %1157 = vmatprep.subr.mxu0 0.0
  %v1158 = vand.u32 %v62, 4294901760
  %1159 = vmatpush1.msra.mxu0 %v1158
  %1160 = vmatprep.subr.mxu0 0.0
  %v1161 = vand.u32 %v61, 4294901760
  %1162 = vmatpush1.msra.mxu0 %v1161
  %1163 = vmatprep.subr.mxu0 0.0
  %v1164 = vand.u32 %v60, 4294901760
  %1165 = vmatpush1.msra.mxu0 %v1164
  %1166 = vmatprep.subr.mxu0 0.0
  %v1167 = vand.u32 %v59, 4294901760
  %1168 = vmatpush1.msra.mxu0 %v1167
  %1169 = vmatprep.subr.mxu0 0.0
  %v1170 = vand.u32 %v90, 4294901760
  %1171 = vmatpush2.msra.mxu0 %v1170
  %1172 = vmatprep.subr.mxu0 0.0
  %v1173 = vand.u32 %v89, 4294901760
  %1174 = vmatpush2.msra.mxu0 %v1173
  %1175 = vmatprep.subr.mxu0 0.0
  %v1176 = vand.u32 %v88, 4294901760
  %1177 = vmatpush2.msra.mxu0 %v1176
  %1178 = vmatprep.subr.mxu0 0.0
  %v1179 = vand.u32 %v87, 4294901760
  %1180 = vmatpush2.msra.mxu0 %v1179
  %1181 = vmatprep.subr.mxu0 0.0
  %v1182 = vand.u32 %v86, 4294901760
  %1183 = vmatpush2.msra.mxu0 %v1182
  %1184 = vmatprep.subr.mxu0 0.0
  %v1185 = vand.u32 %v85, 4294901760
  %1186 = vmatpush2.msra.mxu0 %v1185
  %1187 = vmatprep.subr.mxu0 0.0
  %v1188 = vand.u32 %v84, 4294901760
  %1189 = vmatpush2.msra.mxu0 %v1188
  %1190 = vmatprep.subr.mxu0 0.0
  %v1191 = vand.u32 %v83, 4294901760
  %1192 = vmatpush2.msra.mxu0 %v1191
  %1193 = vmatprep.subr.mxu0 0.0
  %v1194 = vand.u32 %v82, 4294901760
  %1195 = vmatpush2.msra.mxu0 %v1194
  %1196 = vmatprep.subr.mxu0 0.0
  %v1197 = vand.u32 %v81, 4294901760
  %1198 = vmatpush2.msra.mxu0 %v1197
  %1199 = vmatprep.subr.mxu0 0.0
  %v1200 = vand.u32 %v80, 4294901760
  %1201 = vmatpush2.msra.mxu0 %v1200
  %1202 = vmatprep.subr.mxu0 0.0
  %v1203 = vand.u32 %v79, 4294901760
  %1204 = vmatpush2.msra.mxu0 %v1203
  %1205 = vmatprep.subr.mxu0 0.0
  %v1206 = vand.u32 %v78, 4294901760
  %1207 = vmatpush2.msra.mxu0 %v1206
  %1208 = vmatprep.subr.mxu0 0.0
  %v1209 = vand.u32 %v77, 4294901760
  %1210 = vmatpush2.msra.mxu0 %v1209
  %1211 = vmatprep.subr.mxu0 0.0
  %v1212 = vand.u32 %v76, 4294901760
  %1213 = vmatpush2.msra.mxu0 %v1212
  %1214 = vmatprep.subr.mxu0 0.0
  %v1215 = vand.u32 %v75, 4294901760
  %1216 = vmatpush2.msra.mxu0 %v1215
  %v1217 = vand.u32 %v14, 4294901760
  %v1218 = vsub.f32 %v14, %v1217
  %v1219 = vand.u32 %v1218, 4294901760
  %v1220 = vsub.f32 %v1218, %v1219
  %v1221 = vand.u32 %v1220, 4294901760
  %1222 = vmatprep.mubr.f32.mxu0 %v1221
  %v1223 = vand.u32 %v13, 4294901760
  %v1224 = vsub.f32 %v13, %v1223
  %v1225 = vand.u32 %v1224, 4294901760
  %v1226 = vsub.f32 %v1224, %v1225
  %v1227 = vand.u32 %v1226, 4294901760
  %1228 = vmatmul.mubr.f32.gmra.mxu0 %v1227
  %v1229 = vpop.f32.mrf.mxu0
  %v1230 = vadd.f32 %v1097, %v1229
  %v1231 = vpop.f32.mrf.mxu0
  %v1232 = vand.u32 %v18, 4294901760
  %v1233 = vsub.f32 %v18, %v1232
  %v1234 = vand.u32 %v1233, 4294901760
  %v1235 = vsub.f32 %v1233, %v1234
  %v1236 = vand.u32 %v1235, 4294901760
  %1237 = vmatprep.mubr.f32.mxu0 %v1236
  %v1238 = vand.u32 %v17, 4294901760
  %v1239 = vsub.f32 %v17, %v1238
  %v1240 = vand.u32 %v1239, 4294901760
  %v1241 = vsub.f32 %v1239, %v1240
  %v1242 = vand.u32 %v1241, 4294901760
  %1243 = vmatmul.mubr.f32.gmra.mxu0 %v1242
  %v1244 = vpop.f32.mrf.mxu0
  %v1245 = vadd.f32 %v1104, %v1244
  %v1246 = vpop.f32.mrf.mxu0
  %v1247 = vand.u32 %v22, 4294901760
  %v1248 = vsub.f32 %v22, %v1247
  %v1249 = vand.u32 %v1248, 4294901760
  %v1250 = vsub.f32 %v1248, %v1249
  %v1251 = vand.u32 %v1250, 4294901760
  %1252 = vmatprep.mubr.f32.mxu0 %v1251
  %v1253 = vand.u32 %v21, 4294901760
  %v1254 = vsub.f32 %v21, %v1253
  %v1255 = vand.u32 %v1254, 4294901760
  %v1256 = vsub.f32 %v1254, %v1255
  %v1257 = vand.u32 %v1256, 4294901760
  %1258 = vmatmul.mubr.f32.gmra.mxu0 %v1257
  %v1259 = vpop.f32.mrf.mxu0
  %v1260 = vadd.f32 %v1111, %v1259
  %v1261 = vpop.f32.mrf.mxu0
  %v1262 = vand.u32 %v26, 4294901760
  %v1263 = vsub.f32 %v26, %v1262
  %v1264 = vand.u32 %v1263, 4294901760
  %v1265 = vsub.f32 %v1263, %v1264
  %v1266 = vand.u32 %v1265, 4294901760
  %1267 = vmatprep.mubr.f32.mxu0 %v1266
  %v1268 = vand.u32 %v25, 4294901760
  %v1269 = vsub.f32 %v25, %v1268
  %v1270 = vand.u32 %v1269, 4294901760
  %v1271 = vsub.f32 %v1269, %v1270
  %v1272 = vand.u32 %v1271, 4294901760
  %1273 = vmatmul.mubr.f32.gmra.mxu0 %v1272
  %v1274 = vpop.f32.mrf.mxu0
  %v1275 = vadd.f32 %v1118, %v1274
  %v1276 = vpop.f32.mrf.mxu0
  %1277 = vdwg.mxu0
  %1278 = vmatprep.subr.mxu0 0.0
  %v1279 = vand.u32 %v74, 4294901760
  %v1280 = vsub.f32 %v74, %v1279
  %v1281 = vand.u32 %v1280, 4294901760
  %v1282 = vsub.f32 %v1280, %v1281
  %v1283 = vand.u32 %v1282, 4294901760
  %1284 = vmatpush1.msra.mxu0 %v1283
  %1285 = vmatprep.subr.mxu0 0.0
  %v1286 = vand.u32 %v73, 4294901760
  %v1287 = vsub.f32 %v73, %v1286
  %v1288 = vand.u32 %v1287, 4294901760
  %v1289 = vsub.f32 %v1287, %v1288
  %v1290 = vand.u32 %v1289, 4294901760
  %1291 = vmatpush1.msra.mxu0 %v1290
  %1292 = vmatprep.subr.mxu0 0.0
  %v1293 = vand.u32 %v72, 4294901760
  %v1294 = vsub.f32 %v72, %v1293
  %v1295 = vand.u32 %v1294, 4294901760
  %v1296 = vsub.f32 %v1294, %v1295
  %v1297 = vand.u32 %v1296, 4294901760
  %1298 = vmatpush1.msra.mxu0 %v1297
  %1299 = vmatprep.subr.mxu0 0.0
  %v1300 = vand.u32 %v71, 4294901760
  %v1301 = vsub.f32 %v71, %v1300
  %v1302 = vand.u32 %v1301, 4294901760
  %v1303 = vsub.f32 %v1301, %v1302
  %v1304 = vand.u32 %v1303, 4294901760
  %1305 = vmatpush1.msra.mxu0 %v1304
  %1306 = vmatprep.subr.mxu0 0.0
  %v1307 = vand.u32 %v70, 4294901760
  %v1308 = vsub.f32 %v70, %v1307
  %v1309 = vand.u32 %v1308, 4294901760
  %v1310 = vsub.f32 %v1308, %v1309
  %v1311 = vand.u32 %v1310, 4294901760
  %1312 = vmatpush1.msra.mxu0 %v1311
  %1313 = vmatprep.subr.mxu0 0.0
  %v1314 = vand.u32 %v69, 4294901760
  %v1315 = vsub.f32 %v69, %v1314
  %v1316 = vand.u32 %v1315, 4294901760
  %v1317 = vsub.f32 %v1315, %v1316
  %v1318 = vand.u32 %v1317, 4294901760
  %1319 = vmatpush1.msra.mxu0 %v1318
  %1320 = vmatprep.subr.mxu0 0.0
  %v1321 = vand.u32 %v68, 4294901760
  %v1322 = vsub.f32 %v68, %v1321
  %v1323 = vand.u32 %v1322, 4294901760
  %v1324 = vsub.f32 %v1322, %v1323
  %v1325 = vand.u32 %v1324, 4294901760
  %1326 = vmatpush1.msra.mxu0 %v1325
  %1327 = vmatprep.subr.mxu0 0.0
  %v1328 = vand.u32 %v67, 4294901760
  %v1329 = vsub.f32 %v67, %v1328
  %v1330 = vand.u32 %v1329, 4294901760
  %v1331 = vsub.f32 %v1329, %v1330
  %v1332 = vand.u32 %v1331, 4294901760
  %1333 = vmatpush1.msra.mxu0 %v1332
  %1334 = vmatprep.subr.mxu0 0.0
  %v1335 = vand.u32 %v66, 4294901760
  %v1336 = vsub.f32 %v66, %v1335
  %v1337 = vand.u32 %v1336, 4294901760
  %v1338 = vsub.f32 %v1336, %v1337
  %v1339 = vand.u32 %v1338, 4294901760
  %1340 = vmatpush1.msra.mxu0 %v1339
  %1341 = vmatprep.subr.mxu0 0.0
  %v1342 = vand.u32 %v65, 4294901760
  %v1343 = vsub.f32 %v65, %v1342
  %v1344 = vand.u32 %v1343, 4294901760
  %v1345 = vsub.f32 %v1343, %v1344
  %v1346 = vand.u32 %v1345, 4294901760
  %1347 = vmatpush1.msra.mxu0 %v1346
  %1348 = vmatprep.subr.mxu0 0.0
  %v1349 = vand.u32 %v64, 4294901760
  %v1350 = vsub.f32 %v64, %v1349
  %v1351 = vand.u32 %v1350, 4294901760
  %v1352 = vsub.f32 %v1350, %v1351
  %v1353 = vand.u32 %v1352, 4294901760
  %1354 = vmatpush1.msra.mxu0 %v1353
  %1355 = vmatprep.subr.mxu0 0.0
  %v1356 = vand.u32 %v63, 4294901760
  %v1357 = vsub.f32 %v63, %v1356
  %v1358 = vand.u32 %v1357, 4294901760
  %v1359 = vsub.f32 %v1357, %v1358
  %v1360 = vand.u32 %v1359, 4294901760
  %1361 = vmatpush1.msra.mxu0 %v1360
  %1362 = vmatprep.subr.mxu0 0.0
  %v1363 = vand.u32 %v62, 4294901760
  %v1364 = vsub.f32 %v62, %v1363
  %v1365 = vand.u32 %v1364, 4294901760
  %v1366 = vsub.f32 %v1364, %v1365
  %v1367 = vand.u32 %v1366, 4294901760
  %1368 = vmatpush1.msra.mxu0 %v1367
  %1369 = vmatprep.subr.mxu0 0.0
  %v1370 = vand.u32 %v61, 4294901760
  %v1371 = vsub.f32 %v61, %v1370
  %v1372 = vand.u32 %v1371, 4294901760
  %v1373 = vsub.f32 %v1371, %v1372
  %v1374 = vand.u32 %v1373, 4294901760
  %1375 = vmatpush1.msra.mxu0 %v1374
  %1376 = vmatprep.subr.mxu0 0.0
  %v1377 = vand.u32 %v60, 4294901760
  %v1378 = vsub.f32 %v60, %v1377
  %v1379 = vand.u32 %v1378, 4294901760
  %v1380 = vsub.f32 %v1378, %v1379
  %v1381 = vand.u32 %v1380, 4294901760
  %1382 = vmatpush1.msra.mxu0 %v1381
  %1383 = vmatprep.subr.mxu0 0.0
  %v1384 = vand.u32 %v59, 4294901760
  %v1385 = vsub.f32 %v59, %v1384
  %v1386 = vand.u32 %v1385, 4294901760
  %v1387 = vsub.f32 %v1385, %v1386
  %v1388 = vand.u32 %v1387, 4294901760
  %1389 = vmatpush1.msra.mxu0 %v1388
  %1390 = vmatprep.subr.mxu0 0.0
  %v1391 = vand.u32 %v90, 4294901760
  %v1392 = vsub.f32 %v90, %v1391
  %v1393 = vand.u32 %v1392, 4294901760
  %v1394 = vsub.f32 %v1392, %v1393
  %v1395 = vand.u32 %v1394, 4294901760
  %1396 = vmatpush2.msra.mxu0 %v1395
  %1397 = vmatprep.subr.mxu0 0.0
  %v1398 = vand.u32 %v89, 4294901760
  %v1399 = vsub.f32 %v89, %v1398
  %v1400 = vand.u32 %v1399, 4294901760
  %v1401 = vsub.f32 %v1399, %v1400
  %v1402 = vand.u32 %v1401, 4294901760
  %1403 = vmatpush2.msra.mxu0 %v1402
  %1404 = vmatprep.subr.mxu0 0.0
  %v1405 = vand.u32 %v88, 4294901760
  %v1406 = vsub.f32 %v88, %v1405
  %v1407 = vand.u32 %v1406, 4294901760
  %v1408 = vsub.f32 %v1406, %v1407
  %v1409 = vand.u32 %v1408, 4294901760
  %1410 = vmatpush2.msra.mxu0 %v1409
  %1411 = vmatprep.subr.mxu0 0.0
  %v1412 = vand.u32 %v87, 4294901760
  %v1413 = vsub.f32 %v87, %v1412
  %v1414 = vand.u32 %v1413, 4294901760
  %v1415 = vsub.f32 %v1413, %v1414
  %v1416 = vand.u32 %v1415, 4294901760
  %1417 = vmatpush2.msra.mxu0 %v1416
  %1418 = vmatprep.subr.mxu0 0.0
  %v1419 = vand.u32 %v86, 4294901760
  %v1420 = vsub.f32 %v86, %v1419
  %v1421 = vand.u32 %v1420, 4294901760
  %v1422 = vsub.f32 %v1420, %v1421
  %v1423 = vand.u32 %v1422, 4294901760
  %1424 = vmatpush2.msra.mxu0 %v1423
  %1425 = vmatprep.subr.mxu0 0.0
  %v1426 = vand.u32 %v85, 4294901760
  %v1427 = vsub.f32 %v85, %v1426
  %v1428 = vand.u32 %v1427, 4294901760
  %v1429 = vsub.f32 %v1427, %v1428
  %v1430 = vand.u32 %v1429, 4294901760
  %1431 = vmatpush2.msra.mxu0 %v1430
  %1432 = vmatprep.subr.mxu0 0.0
  %v1433 = vand.u32 %v84, 4294901760
  %v1434 = vsub.f32 %v84, %v1433
  %v1435 = vand.u32 %v1434, 4294901760
  %v1436 = vsub.f32 %v1434, %v1435
  %v1437 = vand.u32 %v1436, 4294901760
  %1438 = vmatpush2.msra.mxu0 %v1437
  %1439 = vmatprep.subr.mxu0 0.0
  %v1440 = vand.u32 %v83, 4294901760
  %v1441 = vsub.f32 %v83, %v1440
  %v1442 = vand.u32 %v1441, 4294901760
  %v1443 = vsub.f32 %v1441, %v1442
  %v1444 = vand.u32 %v1443, 4294901760
  %1445 = vmatpush2.msra.mxu0 %v1444
  %1446 = vmatprep.subr.mxu0 0.0
  %v1447 = vand.u32 %v82, 4294901760
  %v1448 = vsub.f32 %v82, %v1447
  %v1449 = vand.u32 %v1448, 4294901760
  %v1450 = vsub.f32 %v1448, %v1449
  %v1451 = vand.u32 %v1450, 4294901760
  %1452 = vmatpush2.msra.mxu0 %v1451
  %1453 = vmatprep.subr.mxu0 0.0
  %v1454 = vand.u32 %v81, 4294901760
  %v1455 = vsub.f32 %v81, %v1454
  %v1456 = vand.u32 %v1455, 4294901760
  %v1457 = vsub.f32 %v1455, %v1456
  %v1458 = vand.u32 %v1457, 4294901760
  %1459 = vmatpush2.msra.mxu0 %v1458
  %1460 = vmatprep.subr.mxu0 0.0
  %v1461 = vand.u32 %v80, 4294901760
  %v1462 = vsub.f32 %v80, %v1461
  %v1463 = vand.u32 %v1462, 4294901760
  %v1464 = vsub.f32 %v1462, %v1463
  %v1465 = vand.u32 %v1464, 4294901760
  %1466 = vmatpush2.msra.mxu0 %v1465
  %1467 = vmatprep.subr.mxu0 0.0
  %v1468 = vand.u32 %v79, 4294901760
  %v1469 = vsub.f32 %v79, %v1468
  %v1470 = vand.u32 %v1469, 4294901760
  %v1471 = vsub.f32 %v1469, %v1470
  %v1472 = vand.u32 %v1471, 4294901760
  %1473 = vmatpush2.msra.mxu0 %v1472
  %1474 = vmatprep.subr.mxu0 0.0
  %v1475 = vand.u32 %v78, 4294901760
  %v1476 = vsub.f32 %v78, %v1475
  %v1477 = vand.u32 %v1476, 4294901760
  %v1478 = vsub.f32 %v1476, %v1477
  %v1479 = vand.u32 %v1478, 4294901760
  %1480 = vmatpush2.msra.mxu0 %v1479
  %1481 = vmatprep.subr.mxu0 0.0
  %v1482 = vand.u32 %v77, 4294901760
  %v1483 = vsub.f32 %v77, %v1482
  %v1484 = vand.u32 %v1483, 4294901760
  %v1485 = vsub.f32 %v1483, %v1484
  %v1486 = vand.u32 %v1485, 4294901760
  %1487 = vmatpush2.msra.mxu0 %v1486
  %1488 = vmatprep.subr.mxu0 0.0
  %v1489 = vand.u32 %v76, 4294901760
  %v1490 = vsub.f32 %v76, %v1489
  %v1491 = vand.u32 %v1490, 4294901760
  %v1492 = vsub.f32 %v1490, %v1491
  %v1493 = vand.u32 %v1492, 4294901760
  %1494 = vmatpush2.msra.mxu0 %v1493
  %1495 = vmatprep.subr.mxu0 0.0
  %v1496 = vand.u32 %v75, 4294901760
  %v1497 = vsub.f32 %v75, %v1496
  %v1498 = vand.u32 %v1497, 4294901760
  %v1499 = vsub.f32 %v1497, %v1498
  %v1500 = vand.u32 %v1499, 4294901760
  %1501 = vmatpush2.msra.mxu0 %v1500
  %v1502 = vand.u32 %v14, 4294901760
  %1503 = vmatprep.mubr.f32.mxu0 %v1502
  %v1504 = vand.u32 %v13, 4294901760
  %1505 = vmatmul.mubr.f32.gmra.mxu0 %v1504
  %v1506 = vpop.f32.mrf.mxu0
  %v1507 = vadd.f32 %v1230, %v1506
  %v1508 = vpop.f32.mrf.mxu0
  %v1509 = vand.u32 %v18, 4294901760
  %1510 = vmatprep.mubr.f32.mxu0 %v1509
  %v1511 = vand.u32 %v17, 4294901760
  %1512 = vmatmul.mubr.f32.gmra.mxu0 %v1511
  %v1513 = vpop.f32.mrf.mxu0
  %v1514 = vadd.f32 %v1245, %v1513
  %v1515 = vpop.f32.mrf.mxu0
  %v1516 = vand.u32 %v22, 4294901760
  %1517 = vmatprep.mubr.f32.mxu0 %v1516
  %v1518 = vand.u32 %v21, 4294901760
  %1519 = vmatmul.mubr.f32.gmra.mxu0 %v1518
  %v1520 = vpop.f32.mrf.mxu0
  %v1521 = vadd.f32 %v1260, %v1520
  %v1522 = vpop.f32.mrf.mxu0
  %v1523 = vand.u32 %v26, 4294901760
  %1524 = vmatprep.mubr.f32.mxu0 %v1523
  %v1525 = vand.u32 %v25, 4294901760
  %1526 = vmatmul.mubr.f32.gmra.mxu0 %v1525
  %v1527 = vpop.f32.mrf.mxu0
  %v1528 = vadd.f32 %v1275, %v1527
  %v1529 = vpop.f32.mrf.mxu0
  %1530 = vdwg.mxu0
  %1531 = vmatprep.subr.mxu0 0.0
  %v1532 = vand.u32 %v74, 4294901760
  %v1533 = vsub.f32 %v74, %v1532
  %1534 = vmatpush1.msra.mxu0 %v1533
  %1535 = vmatprep.subr.mxu0 0.0
  %v1536 = vand.u32 %v73, 4294901760
  %v1537 = vsub.f32 %v73, %v1536
  %1538 = vmatpush1.msra.mxu0 %v1537
  %1539 = vmatprep.subr.mxu0 0.0
  %v1540 = vand.u32 %v72, 4294901760
  %v1541 = vsub.f32 %v72, %v1540
  %1542 = vmatpush1.msra.mxu0 %v1541
  %1543 = vmatprep.subr.mxu0 0.0
  %v1544 = vand.u32 %v71, 4294901760
  %v1545 = vsub.f32 %v71, %v1544
  %1546 = vmatpush1.msra.mxu0 %v1545
  %1547 = vmatprep.subr.mxu0 0.0
  %v1548 = vand.u32 %v70, 4294901760
  %v1549 = vsub.f32 %v70, %v1548
  %1550 = vmatpush1.msra.mxu0 %v1549
  %1551 = vmatprep.subr.mxu0 0.0
  %v1552 = vand.u32 %v69, 4294901760
  %v1553 = vsub.f32 %v69, %v1552
  %1554 = vmatpush1.msra.mxu0 %v1553
  %1555 = vmatprep.subr.mxu0 0.0
  %v1556 = vand.u32 %v68, 4294901760
  %v1557 = vsub.f32 %v68, %v1556
  %1558 = vmatpush1.msra.mxu0 %v1557
  %1559 = vmatprep.subr.mxu0 0.0
  %v1560 = vand.u32 %v67, 4294901760
  %v1561 = vsub.f32 %v67, %v1560
  %1562 = vmatpush1.msra.mxu0 %v1561
  %1563 = vmatprep.subr.mxu0 0.0
  %v1564 = vand.u32 %v66, 4294901760
  %v1565 = vsub.f32 %v66, %v1564
  %1566 = vmatpush1.msra.mxu0 %v1565
  %1567 = vmatprep.subr.mxu0 0.0
  %v1568 = vand.u32 %v65, 4294901760
  %v1569 = vsub.f32 %v65, %v1568
  %1570 = vmatpush1.msra.mxu0 %v1569
  %1571 = vmatprep.subr.mxu0 0.0
  %v1572 = vand.u32 %v64, 4294901760
  %v1573 = vsub.f32 %v64, %v1572
  %1574 = vmatpush1.msra.mxu0 %v1573
  %1575 = vmatprep.subr.mxu0 0.0
  %v1576 = vand.u32 %v63, 4294901760
  %v1577 = vsub.f32 %v63, %v1576
  %1578 = vmatpush1.msra.mxu0 %v1577
  %1579 = vmatprep.subr.mxu0 0.0
  %v1580 = vand.u32 %v62, 4294901760
  %v1581 = vsub.f32 %v62, %v1580
  %1582 = vmatpush1.msra.mxu0 %v1581
  %1583 = vmatprep.subr.mxu0 0.0
  %v1584 = vand.u32 %v61, 4294901760
  %v1585 = vsub.f32 %v61, %v1584
  %1586 = vmatpush1.msra.mxu0 %v1585
  %1587 = vmatprep.subr.mxu0 0.0
  %v1588 = vand.u32 %v60, 4294901760
  %v1589 = vsub.f32 %v60, %v1588
  %1590 = vmatpush1.msra.mxu0 %v1589
  %1591 = vmatprep.subr.mxu0 0.0
  %v1592 = vand.u32 %v59, 4294901760
  %v1593 = vsub.f32 %v59, %v1592
  %1594 = vmatpush1.msra.mxu0 %v1593
  %1595 = vmatprep.subr.mxu0 0.0
  %v1596 = vand.u32 %v90, 4294901760
  %v1597 = vsub.f32 %v90, %v1596
  %1598 = vmatpush2.msra.mxu0 %v1597
  %1599 = vmatprep.subr.mxu0 0.0
  %v1600 = vand.u32 %v89, 4294901760
  %v1601 = vsub.f32 %v89, %v1600
  %1602 = vmatpush2.msra.mxu0 %v1601
  %1603 = vmatprep.subr.mxu0 0.0
  %v1604 = vand.u32 %v88, 4294901760
  %v1605 = vsub.f32 %v88, %v1604
  %1606 = vmatpush2.msra.mxu0 %v1605
  %1607 = vmatprep.subr.mxu0 0.0
  %v1608 = vand.u32 %v87, 4294901760
  %v1609 = vsub.f32 %v87, %v1608
  %1610 = vmatpush2.msra.mxu0 %v1609
  %1611 = vmatprep.subr.mxu0 0.0
  %v1612 = vand.u32 %v86, 4294901760
  %v1613 = vsub.f32 %v86, %v1612
  %1614 = vmatpush2.msra.mxu0 %v1613
  %1615 = vmatprep.subr.mxu0 0.0
  %v1616 = vand.u32 %v85, 4294901760
  %v1617 = vsub.f32 %v85, %v1616
  %1618 = vmatpush2.msra.mxu0 %v1617
  %1619 = vmatprep.subr.mxu0 0.0
  %v1620 = vand.u32 %v84, 4294901760
  %v1621 = vsub.f32 %v84, %v1620
  %1622 = vmatpush2.msra.mxu0 %v1621
  %1623 = vmatprep.subr.mxu0 0.0
  %v1624 = vand.u32 %v83, 4294901760
  %v1625 = vsub.f32 %v83, %v1624
  %1626 = vmatpush2.msra.mxu0 %v1625
  %1627 = vmatprep.subr.mxu0 0.0
  %v1628 = vand.u32 %v82, 4294901760
  %v1629 = vsub.f32 %v82, %v1628
  %1630 = vmatpush2.msra.mxu0 %v1629
  %1631 = vmatprep.subr.mxu0 0.0
  %v1632 = vand.u32 %v81, 4294901760
  %v1633 = vsub.f32 %v81, %v1632
  %1634 = vmatpush2.msra.mxu0 %v1633
  %1635 = vmatprep.subr.mxu0 0.0
  %v1636 = vand.u32 %v80, 4294901760
  %v1637 = vsub.f32 %v80, %v1636
  %1638 = vmatpush2.msra.mxu0 %v1637
  %1639 = vmatprep.subr.mxu0 0.0
  %v1640 = vand.u32 %v79, 4294901760
  %v1641 = vsub.f32 %v79, %v1640
  %1642 = vmatpush2.msra.mxu0 %v1641
  %1643 = vmatprep.subr.mxu0 0.0
  %v1644 = vand.u32 %v78, 4294901760
  %v1645 = vsub.f32 %v78, %v1644
  %1646 = vmatpush2.msra.mxu0 %v1645
  %1647 = vmatprep.subr.mxu0 0.0
  %v1648 = vand.u32 %v77, 4294901760
  %v1649 = vsub.f32 %v77, %v1648
  %1650 = vmatpush2.msra.mxu0 %v1649
  %1651 = vmatprep.subr.mxu0 0.0
  %v1652 = vand.u32 %v76, 4294901760
  %v1653 = vsub.f32 %v76, %v1652
  %1654 = vmatpush2.msra.mxu0 %v1653
  %1655 = vmatprep.subr.mxu0 0.0
  %v1656 = vand.u32 %v75, 4294901760
  %v1657 = vsub.f32 %v75, %v1656
  %1658 = vmatpush2.msra.mxu0 %v1657
  %v1659 = vand.u32 %v14, 4294901760
  %v1660 = vsub.f32 %v14, %v1659
  %1661 = vmatprep.mubr.f32.mxu0 %v1660
  %v1662 = vand.u32 %v13, 4294901760
  %v1663 = vsub.f32 %v13, %v1662
  %1664 = vmatmul.mubr.f32.gmra.mxu0 %v1663
  %v1665 = vpop.f32.mrf.mxu0
  %v1666 = vadd.f32 %v1507, %v1665
  %v1667 = vpop.f32.mrf.mxu0
  %v1668 = vand.u32 %v18, 4294901760
  %v1669 = vsub.f32 %v18, %v1668
  %1670 = vmatprep.mubr.f32.mxu0 %v1669
  %v1671 = vand.u32 %v17, 4294901760
  %v1672 = vsub.f32 %v17, %v1671
  %1673 = vmatmul.mubr.f32.gmra.mxu0 %v1672
  %v1674 = vpop.f32.mrf.mxu0
  %v1675 = vadd.f32 %v1514, %v1674
  %v1676 = vpop.f32.mrf.mxu0
  %v1677 = vand.u32 %v22, 4294901760
  %v1678 = vsub.f32 %v22, %v1677
  %1679 = vmatprep.mubr.f32.mxu0 %v1678
  %v1680 = vand.u32 %v21, 4294901760
  %v1681 = vsub.f32 %v21, %v1680
  %1682 = vmatmul.mubr.f32.gmra.mxu0 %v1681
  %v1683 = vpop.f32.mrf.mxu0
  %v1684 = vadd.f32 %v1521, %v1683
  %v1685 = vpop.f32.mrf.mxu0
  %v1686 = vand.u32 %v26, 4294901760
  %v1687 = vsub.f32 %v26, %v1686
  %1688 = vmatprep.mubr.f32.mxu0 %v1687
  %v1689 = vand.u32 %v25, 4294901760
  %v1690 = vsub.f32 %v25, %v1689
  %1691 = vmatmul.mubr.f32.gmra.mxu0 %v1690
  %v1692 = vpop.f32.mrf.mxu0
  %v1693 = vadd.f32 %v1528, %v1692
  %v1694 = vpop.f32.mrf.mxu0
  %1695 = vdwg.mxu0
  %1696 = vmatprep.subr.mxu0 0.0
  %v1697 = vand.u32 %v74, 4294901760
  %1698 = vmatpush1.msra.mxu0 %v1697
  %1699 = vmatprep.subr.mxu0 0.0
  %v1700 = vand.u32 %v73, 4294901760
  %1701 = vmatpush1.msra.mxu0 %v1700
  %1702 = vmatprep.subr.mxu0 0.0
  %v1703 = vand.u32 %v72, 4294901760
  %1704 = vmatpush1.msra.mxu0 %v1703
  %1705 = vmatprep.subr.mxu0 0.0
  %v1706 = vand.u32 %v71, 4294901760
  %1707 = vmatpush1.msra.mxu0 %v1706
  %1708 = vmatprep.subr.mxu0 0.0
  %v1709 = vand.u32 %v70, 4294901760
  %1710 = vmatpush1.msra.mxu0 %v1709
  %1711 = vmatprep.subr.mxu0 0.0
  %v1712 = vand.u32 %v69, 4294901760
  %1713 = vmatpush1.msra.mxu0 %v1712
  %1714 = vmatprep.subr.mxu0 0.0
  %v1715 = vand.u32 %v68, 4294901760
  %1716 = vmatpush1.msra.mxu0 %v1715
  %1717 = vmatprep.subr.mxu0 0.0
  %v1718 = vand.u32 %v67, 4294901760
  %1719 = vmatpush1.msra.mxu0 %v1718
  %1720 = vmatprep.subr.mxu0 0.0
  %v1721 = vand.u32 %v66, 4294901760
  %1722 = vmatpush1.msra.mxu0 %v1721
  %1723 = vmatprep.subr.mxu0 0.0
  %v1724 = vand.u32 %v65, 4294901760
  %1725 = vmatpush1.msra.mxu0 %v1724
  %1726 = vmatprep.subr.mxu0 0.0
  %v1727 = vand.u32 %v64, 4294901760
  %1728 = vmatpush1.msra.mxu0 %v1727
  %1729 = vmatprep.subr.mxu0 0.0
  %v1730 = vand.u32 %v63, 4294901760
  %1731 = vmatpush1.msra.mxu0 %v1730
  %1732 = vmatprep.subr.mxu0 0.0
  %v1733 = vand.u32 %v62, 4294901760
  %1734 = vmatpush1.msra.mxu0 %v1733
  %1735 = vmatprep.subr.mxu0 0.0
  %v1736 = vand.u32 %v61, 4294901760
  %1737 = vmatpush1.msra.mxu0 %v1736
  %1738 = vmatprep.subr.mxu0 0.0
  %v1739 = vand.u32 %v60, 4294901760
  %1740 = vmatpush1.msra.mxu0 %v1739
  %1741 = vmatprep.subr.mxu0 0.0
  %v1742 = vand.u32 %v59, 4294901760
  %1743 = vmatpush1.msra.mxu0 %v1742
  %1744 = vmatprep.subr.mxu0 0.0
  %v1745 = vand.u32 %v90, 4294901760
  %1746 = vmatpush2.msra.mxu0 %v1745
  %1747 = vmatprep.subr.mxu0 0.0
  %v1748 = vand.u32 %v89, 4294901760
  %1749 = vmatpush2.msra.mxu0 %v1748
  %1750 = vmatprep.subr.mxu0 0.0
  %v1751 = vand.u32 %v88, 4294901760
  %1752 = vmatpush2.msra.mxu0 %v1751
  %1753 = vmatprep.subr.mxu0 0.0
  %v1754 = vand.u32 %v87, 4294901760
  %1755 = vmatpush2.msra.mxu0 %v1754
  %1756 = vmatprep.subr.mxu0 0.0
  %v1757 = vand.u32 %v86, 4294901760
  %1758 = vmatpush2.msra.mxu0 %v1757
  %1759 = vmatprep.subr.mxu0 0.0
  %v1760 = vand.u32 %v85, 4294901760
  %1761 = vmatpush2.msra.mxu0 %v1760
  %1762 = vmatprep.subr.mxu0 0.0
  %v1763 = vand.u32 %v84, 4294901760
  %1764 = vmatpush2.msra.mxu0 %v1763
  %1765 = vmatprep.subr.mxu0 0.0
  %v1766 = vand.u32 %v83, 4294901760
  %1767 = vmatpush2.msra.mxu0 %v1766
  %1768 = vmatprep.subr.mxu0 0.0
  %v1769 = vand.u32 %v82, 4294901760
  %1770 = vmatpush2.msra.mxu0 %v1769
  %1771 = vmatprep.subr.mxu0 0.0
  %v1772 = vand.u32 %v81, 4294901760
  %1773 = vmatpush2.msra.mxu0 %v1772
  %1774 = vmatprep.subr.mxu0 0.0
  %v1775 = vand.u32 %v80, 4294901760
  %1776 = vmatpush2.msra.mxu0 %v1775
  %1777 = vmatprep.subr.mxu0 0.0
  %v1778 = vand.u32 %v79, 4294901760
  %1779 = vmatpush2.msra.mxu0 %v1778
  %1780 = vmatprep.subr.mxu0 0.0
  %v1781 = vand.u32 %v78, 4294901760
  %1782 = vmatpush2.msra.mxu0 %v1781
  %1783 = vmatprep.subr.mxu0 0.0
  %v1784 = vand.u32 %v77, 4294901760
  %1785 = vmatpush2.msra.mxu0 %v1784
  %1786 = vmatprep.subr.mxu0 0.0
  %v1787 = vand.u32 %v76, 4294901760
  %1788 = vmatpush2.msra.mxu0 %v1787
  %1789 = vmatprep.subr.mxu0 0.0
  %v1790 = vand.u32 %v75, 4294901760
  %1791 = vmatpush2.msra.mxu0 %v1790
  %v1792 = vand.u32 %v14, 4294901760
  %v1793 = vsub.f32 %v14, %v1792
  %v1794 = vand.u32 %v1793, 4294901760
  %1795 = vmatprep.mubr.f32.mxu0 %v1794
  %v1796 = vand.u32 %v13, 4294901760
  %v1797 = vsub.f32 %v13, %v1796
  %v1798 = vand.u32 %v1797, 4294901760
  %1799 = vmatmul.mubr.f32.gmra.mxu0 %v1798
  %v1800 = vpop.f32.mrf.mxu0
  %v1801 = vadd.f32 %v1666, %v1800
  %v1802 = vpop.f32.mrf.mxu0
  %v1803 = vand.u32 %v18, 4294901760
  %v1804 = vsub.f32 %v18, %v1803
  %v1805 = vand.u32 %v1804, 4294901760
  %1806 = vmatprep.mubr.f32.mxu0 %v1805
  %v1807 = vand.u32 %v17, 4294901760
  %v1808 = vsub.f32 %v17, %v1807
  %v1809 = vand.u32 %v1808, 4294901760
  %1810 = vmatmul.mubr.f32.gmra.mxu0 %v1809
  %v1811 = vpop.f32.mrf.mxu0
  %v1812 = vadd.f32 %v1675, %v1811
  %v1813 = vpop.f32.mrf.mxu0
  %v1814 = vand.u32 %v22, 4294901760
  %v1815 = vsub.f32 %v22, %v1814
  %v1816 = vand.u32 %v1815, 4294901760
  %1817 = vmatprep.mubr.f32.mxu0 %v1816
  %v1818 = vand.u32 %v21, 4294901760
  %v1819 = vsub.f32 %v21, %v1818
  %v1820 = vand.u32 %v1819, 4294901760
  %1821 = vmatmul.mubr.f32.gmra.mxu0 %v1820
  %v1822 = vpop.f32.mrf.mxu0
  %v1823 = vadd.f32 %v1684, %v1822
  %v1824 = vpop.f32.mrf.mxu0
  %v1825 = vand.u32 %v26, 4294901760
  %v1826 = vsub.f32 %v26, %v1825
  %v1827 = vand.u32 %v1826, 4294901760
  %1828 = vmatprep.mubr.f32.mxu0 %v1827
  %v1829 = vand.u32 %v25, 4294901760
  %v1830 = vsub.f32 %v25, %v1829
  %v1831 = vand.u32 %v1830, 4294901760
  %1832 = vmatmul.mubr.f32.gmra.mxu0 %v1831
  %v1833 = vpop.f32.mrf.mxu0
  %v1834 = vadd.f32 %v1693, %v1833
  %v1835 = vpop.f32.mrf.mxu0
  %1836 = vdwg.mxu0
  %1837 = vmatprep.subr.mxu0 0.0
  %v1838 = vand.u32 %v74, 4294901760
  %v1839 = vsub.f32 %v74, %v1838
  %v1840 = vand.u32 %v1839, 4294901760
  %1841 = vmatpush1.msra.mxu0 %v1840
  %1842 = vmatprep.subr.mxu0 0.0
  %v1843 = vand.u32 %v73, 4294901760
  %v1844 = vsub.f32 %v73, %v1843
  %v1845 = vand.u32 %v1844, 4294901760
  %1846 = vmatpush1.msra.mxu0 %v1845
  %1847 = vmatprep.subr.mxu0 0.0
  %v1848 = vand.u32 %v72, 4294901760
  %v1849 = vsub.f32 %v72, %v1848
  %v1850 = vand.u32 %v1849, 4294901760
  %1851 = vmatpush1.msra.mxu0 %v1850
  %1852 = vmatprep.subr.mxu0 0.0
  %v1853 = vand.u32 %v71, 4294901760
  %v1854 = vsub.f32 %v71, %v1853
  %v1855 = vand.u32 %v1854, 4294901760
  %1856 = vmatpush1.msra.mxu0 %v1855
  %1857 = vmatprep.subr.mxu0 0.0
  %v1858 = vand.u32 %v70, 4294901760
  %v1859 = vsub.f32 %v70, %v1858
  %v1860 = vand.u32 %v1859, 4294901760
  %1861 = vmatpush1.msra.mxu0 %v1860
  %1862 = vmatprep.subr.mxu0 0.0
  %v1863 = vand.u32 %v69, 4294901760
  %v1864 = vsub.f32 %v69, %v1863
  %v1865 = vand.u32 %v1864, 4294901760
  %1866 = vmatpush1.msra.mxu0 %v1865
  %1867 = vmatprep.subr.mxu0 0.0
  %v1868 = vand.u32 %v68, 4294901760
  %v1869 = vsub.f32 %v68, %v1868
  %v1870 = vand.u32 %v1869, 4294901760
  %1871 = vmatpush1.msra.mxu0 %v1870
  %1872 = vmatprep.subr.mxu0 0.0
  %v1873 = vand.u32 %v67, 4294901760
  %v1874 = vsub.f32 %v67, %v1873
  %v1875 = vand.u32 %v1874, 4294901760
  %1876 = vmatpush1.msra.mxu0 %v1875
  %1877 = vmatprep.subr.mxu0 0.0
  %v1878 = vand.u32 %v66, 4294901760
  %v1879 = vsub.f32 %v66, %v1878
  %v1880 = vand.u32 %v1879, 4294901760
  %1881 = vmatpush1.msra.mxu0 %v1880
  %1882 = vmatprep.subr.mxu0 0.0
  %v1883 = vand.u32 %v65, 4294901760
  %v1884 = vsub.f32 %v65, %v1883
  %v1885 = vand.u32 %v1884, 4294901760
  %1886 = vmatpush1.msra.mxu0 %v1885
  %1887 = vmatprep.subr.mxu0 0.0
  %v1888 = vand.u32 %v64, 4294901760
  %v1889 = vsub.f32 %v64, %v1888
  %v1890 = vand.u32 %v1889, 4294901760
  %1891 = vmatpush1.msra.mxu0 %v1890
  %1892 = vmatprep.subr.mxu0 0.0
  %v1893 = vand.u32 %v63, 4294901760
  %v1894 = vsub.f32 %v63, %v1893
  %v1895 = vand.u32 %v1894, 4294901760
  %1896 = vmatpush1.msra.mxu0 %v1895
  %1897 = vmatprep.subr.mxu0 0.0
  %v1898 = vand.u32 %v62, 4294901760
  %v1899 = vsub.f32 %v62, %v1898
  %v1900 = vand.u32 %v1899, 4294901760
  %1901 = vmatpush1.msra.mxu0 %v1900
  %1902 = vmatprep.subr.mxu0 0.0
  %v1903 = vand.u32 %v61, 4294901760
  %v1904 = vsub.f32 %v61, %v1903
  %v1905 = vand.u32 %v1904, 4294901760
  %1906 = vmatpush1.msra.mxu0 %v1905
  %1907 = vmatprep.subr.mxu0 0.0
  %v1908 = vand.u32 %v60, 4294901760
  %v1909 = vsub.f32 %v60, %v1908
  %v1910 = vand.u32 %v1909, 4294901760
  %1911 = vmatpush1.msra.mxu0 %v1910
  %1912 = vmatprep.subr.mxu0 0.0
  %v1913 = vand.u32 %v59, 4294901760
  %v1914 = vsub.f32 %v59, %v1913
  %v1915 = vand.u32 %v1914, 4294901760
  %1916 = vmatpush1.msra.mxu0 %v1915
  %1917 = vmatprep.subr.mxu0 0.0
  %v1918 = vand.u32 %v90, 4294901760
  %v1919 = vsub.f32 %v90, %v1918
  %v1920 = vand.u32 %v1919, 4294901760
  %1921 = vmatpush2.msra.mxu0 %v1920
  %1922 = vmatprep.subr.mxu0 0.0
  %v1923 = vand.u32 %v89, 4294901760
  %v1924 = vsub.f32 %v89, %v1923
  %v1925 = vand.u32 %v1924, 4294901760
  %1926 = vmatpush2.msra.mxu0 %v1925
  %1927 = vmatprep.subr.mxu0 0.0
  %v1928 = vand.u32 %v88, 4294901760
  %v1929 = vsub.f32 %v88, %v1928
  %v1930 = vand.u32 %v1929, 4294901760
  %1931 = vmatpush2.msra.mxu0 %v1930
  %1932 = vmatprep.subr.mxu0 0.0
  %v1933 = vand.u32 %v87, 4294901760
  %v1934 = vsub.f32 %v87, %v1933
  %v1935 = vand.u32 %v1934, 4294901760
  %1936 = vmatpush2.msra.mxu0 %v1935
  %1937 = vmatprep.subr.mxu0 0.0
  %v1938 = vand.u32 %v86, 4294901760
  %v1939 = vsub.f32 %v86, %v1938
  %v1940 = vand.u32 %v1939, 4294901760
  %1941 = vmatpush2.msra.mxu0 %v1940
  %1942 = vmatprep.subr.mxu0 0.0
  %v1943 = vand.u32 %v85, 4294901760
  %v1944 = vsub.f32 %v85, %v1943
  %v1945 = vand.u32 %v1944, 4294901760
  %1946 = vmatpush2.msra.mxu0 %v1945
  %1947 = vmatprep.subr.mxu0 0.0
  %v1948 = vand.u32 %v84, 4294901760
  %v1949 = vsub.f32 %v84, %v1948
  %v1950 = vand.u32 %v1949, 4294901760
  %1951 = vmatpush2.msra.mxu0 %v1950
  %1952 = vmatprep.subr.mxu0 0.0
  %v1953 = vand.u32 %v83, 4294901760
  %v1954 = vsub.f32 %v83, %v1953
  %v1955 = vand.u32 %v1954, 4294901760
  %1956 = vmatpush2.msra.mxu0 %v1955
  %1957 = vmatprep.subr.mxu0 0.0
  %v1958 = vand.u32 %v82, 4294901760
  %v1959 = vsub.f32 %v82, %v1958
  %v1960 = vand.u32 %v1959, 4294901760
  %1961 = vmatpush2.msra.mxu0 %v1960
  %1962 = vmatprep.subr.mxu0 0.0
  %v1963 = vand.u32 %v81, 4294901760
  %v1964 = vsub.f32 %v81, %v1963
  %v1965 = vand.u32 %v1964, 4294901760
  %1966 = vmatpush2.msra.mxu0 %v1965
  %1967 = vmatprep.subr.mxu0 0.0
  %v1968 = vand.u32 %v80, 4294901760
  %v1969 = vsub.f32 %v80, %v1968
  %v1970 = vand.u32 %v1969, 4294901760
  %1971 = vmatpush2.msra.mxu0 %v1970
  %1972 = vmatprep.subr.mxu0 0.0
  %v1973 = vand.u32 %v79, 4294901760
  %v1974 = vsub.f32 %v79, %v1973
  %v1975 = vand.u32 %v1974, 4294901760
  %1976 = vmatpush2.msra.mxu0 %v1975
  %1977 = vmatprep.subr.mxu0 0.0
  %v1978 = vand.u32 %v78, 4294901760
  %v1979 = vsub.f32 %v78, %v1978
  %v1980 = vand.u32 %v1979, 4294901760
  %1981 = vmatpush2.msra.mxu0 %v1980
  %1982 = vmatprep.subr.mxu0 0.0
  %v1983 = vand.u32 %v77, 4294901760
  %v1984 = vsub.f32 %v77, %v1983
  %v1985 = vand.u32 %v1984, 4294901760
  %1986 = vmatpush2.msra.mxu0 %v1985
  %1987 = vmatprep.subr.mxu0 0.0
  %v1988 = vand.u32 %v76, 4294901760
  %v1989 = vsub.f32 %v76, %v1988
  %v1990 = vand.u32 %v1989, 4294901760
  %1991 = vmatpush2.msra.mxu0 %v1990
  %1992 = vmatprep.subr.mxu0 0.0
  %v1993 = vand.u32 %v75, 4294901760
  %v1994 = vsub.f32 %v75, %v1993
  %v1995 = vand.u32 %v1994, 4294901760
  %1996 = vmatpush2.msra.mxu0 %v1995
  %v1997 = vand.u32 %v14, 4294901760
  %1998 = vmatprep.mubr.f32.mxu0 %v1997
  %v1999 = vand.u32 %v13, 4294901760
  %2000 = vmatmul.mubr.f32.gmra.mxu0 %v1999
  %v2001 = vpop.f32.mrf.mxu0
  %v2002 = vadd.f32 %v1801, %v2001
  %v2003 = vpop.f32.mrf.mxu0
  %v2004 = vand.u32 %v18, 4294901760
  %2005 = vmatprep.mubr.f32.mxu0 %v2004
  %v2006 = vand.u32 %v17, 4294901760
  %2007 = vmatmul.mubr.f32.gmra.mxu0 %v2006
  %v2008 = vpop.f32.mrf.mxu0
  %v2009 = vadd.f32 %v1812, %v2008
  %v2010 = vpop.f32.mrf.mxu0
  %v2011 = vand.u32 %v22, 4294901760
  %2012 = vmatprep.mubr.f32.mxu0 %v2011
  %v2013 = vand.u32 %v21, 4294901760
  %2014 = vmatmul.mubr.f32.gmra.mxu0 %v2013
  %v2015 = vpop.f32.mrf.mxu0
  %v2016 = vadd.f32 %v1823, %v2015
  %v2017 = vpop.f32.mrf.mxu0
  %v2018 = vand.u32 %v26, 4294901760
  %2019 = vmatprep.mubr.f32.mxu0 %v2018
  %v2020 = vand.u32 %v25, 4294901760
  %2021 = vmatmul.mubr.f32.gmra.mxu0 %v2020
  %v2022 = vpop.f32.mrf.mxu0
  %v2023 = vadd.f32 %v1834, %v2022
  %v2024 = vpop.f32.mrf.mxu0
  %2025 = vdwg.mxu0
  %2026 = vmatprep.subr.mxu0 0.0
  %v2027 = vand.u32 %v74, 4294901760
  %2028 = vmatpush1.msra.mxu0 %v2027
  %2029 = vmatprep.subr.mxu0 0.0
  %v2030 = vand.u32 %v73, 4294901760
  %2031 = vmatpush1.msra.mxu0 %v2030
  %2032 = vmatprep.subr.mxu0 0.0
  %v2033 = vand.u32 %v72, 4294901760
  %2034 = vmatpush1.msra.mxu0 %v2033
  %2035 = vmatprep.subr.mxu0 0.0
  %v2036 = vand.u32 %v71, 4294901760
  %2037 = vmatpush1.msra.mxu0 %v2036
  %2038 = vmatprep.subr.mxu0 0.0
  %v2039 = vand.u32 %v70, 4294901760
  %2040 = vmatpush1.msra.mxu0 %v2039
  %2041 = vmatprep.subr.mxu0 0.0
  %v2042 = vand.u32 %v69, 4294901760
  %2043 = vmatpush1.msra.mxu0 %v2042
  %2044 = vmatprep.subr.mxu0 0.0
  %v2045 = vand.u32 %v68, 4294901760
  %2046 = vmatpush1.msra.mxu0 %v2045
  %2047 = vmatprep.subr.mxu0 0.0
  %v2048 = vand.u32 %v67, 4294901760
  %2049 = vmatpush1.msra.mxu0 %v2048
  %2050 = vmatprep.subr.mxu0 0.0
  %v2051 = vand.u32 %v66, 4294901760
  %2052 = vmatpush1.msra.mxu0 %v2051
  %2053 = vmatprep.subr.mxu0 0.0
  %v2054 = vand.u32 %v65, 4294901760
  %2055 = vmatpush1.msra.mxu0 %v2054
  %2056 = vmatprep.subr.mxu0 0.0
  %v2057 = vand.u32 %v64, 4294901760
  %2058 = vmatpush1.msra.mxu0 %v2057
  %2059 = vmatprep.subr.mxu0 0.0
  %v2060 = vand.u32 %v63, 4294901760
  %2061 = vmatpush1.msra.mxu0 %v2060
  %2062 = vmatprep.subr.mxu0 0.0
  %v2063 = vand.u32 %v62, 4294901760
  %2064 = vmatpush1.msra.mxu0 %v2063
  %2065 = vmatprep.subr.mxu0 0.0
  %v2066 = vand.u32 %v61, 4294901760
  %2067 = vmatpush1.msra.mxu0 %v2066
  %2068 = vmatprep.subr.mxu0 0.0
  %v2069 = vand.u32 %v60, 4294901760
  %2070 = vmatpush1.msra.mxu0 %v2069
  %2071 = vmatprep.subr.mxu0 0.0
  %v2072 = vand.u32 %v59, 4294901760
  %2073 = vmatpush1.msra.mxu0 %v2072
  %2074 = vmatprep.subr.mxu0 0.0
  %v2075 = vand.u32 %v90, 4294901760
  %2076 = vmatpush2.msra.mxu0 %v2075
  %2077 = vmatprep.subr.mxu0 0.0
  %v2078 = vand.u32 %v89, 4294901760
  %2079 = vmatpush2.msra.mxu0 %v2078
  %2080 = vmatprep.subr.mxu0 0.0
  %v2081 = vand.u32 %v88, 4294901760
  %2082 = vmatpush2.msra.mxu0 %v2081
  %2083 = vmatprep.subr.mxu0 0.0
  %v2084 = vand.u32 %v87, 4294901760
  %2085 = vmatpush2.msra.mxu0 %v2084
  %2086 = vmatprep.subr.mxu0 0.0
  %v2087 = vand.u32 %v86, 4294901760
  %2088 = vmatpush2.msra.mxu0 %v2087
  %2089 = vmatprep.subr.mxu0 0.0
  %v2090 = vand.u32 %v85, 4294901760
  %2091 = vmatpush2.msra.mxu0 %v2090
  %2092 = vmatprep.subr.mxu0 0.0
  %v2093 = vand.u32 %v84, 4294901760
  %2094 = vmatpush2.msra.mxu0 %v2093
  %2095 = vmatprep.subr.mxu0 0.0
  %v2096 = vand.u32 %v83, 4294901760
  %2097 = vmatpush2.msra.mxu0 %v2096
  %2098 = vmatprep.subr.mxu0 0.0
  %v2099 = vand.u32 %v82, 4294901760
  %2100 = vmatpush2.msra.mxu0 %v2099
  %2101 = vmatprep.subr.mxu0 0.0
  %v2102 = vand.u32 %v81, 4294901760
  %2103 = vmatpush2.msra.mxu0 %v2102
  %2104 = vmatprep.subr.mxu0 0.0
  %v2105 = vand.u32 %v80, 4294901760
  %2106 = vmatpush2.msra.mxu0 %v2105
  %2107 = vmatprep.subr.mxu0 0.0
  %v2108 = vand.u32 %v79, 4294901760
  %2109 = vmatpush2.msra.mxu0 %v2108
  %2110 = vmatprep.subr.mxu0 0.0
  %v2111 = vand.u32 %v78, 4294901760
  %2112 = vmatpush2.msra.mxu0 %v2111
  %2113 = vmatprep.subr.mxu0 0.0
  %v2114 = vand.u32 %v77, 4294901760
  %2115 = vmatpush2.msra.mxu0 %v2114
  %2116 = vmatprep.subr.mxu0 0.0
  %v2117 = vand.u32 %v76, 4294901760
  %2118 = vmatpush2.msra.mxu0 %v2117
  %2119 = vmatprep.subr.mxu0 0.0
  %v2120 = vand.u32 %v75, 4294901760
  %2121 = vmatpush2.msra.mxu0 %v2120
  %v2122 = vand.u32 %v14, 4294901760
  %2123 = vmatprep.mubr.f32.mxu0 %v2122
  %v2124 = vand.u32 %v13, 4294901760
  %2125 = vmatmul.mubr.f32.gmra.mxu0 %v2124
  %v2126 = vpop.f32.mrf.mxu0
  %v2127 = vadd.f32 %v2002, %v2126
  %v2128 = vpop.f32.mrf.mxu0
  %v2129 = vand.u32 %v18, 4294901760
  %2130 = vmatprep.mubr.f32.mxu0 %v2129
  %v2131 = vand.u32 %v17, 4294901760
  %2132 = vmatmul.mubr.f32.gmra.mxu0 %v2131
  %v2133 = vpop.f32.mrf.mxu0
  %v2134 = vadd.f32 %v2009, %v2133
  %v2135 = vpop.f32.mrf.mxu0
  %v2136 = vand.u32 %v22, 4294901760
  %2137 = vmatprep.mubr.f32.mxu0 %v2136
  %v2138 = vand.u32 %v21, 4294901760
  %2139 = vmatmul.mubr.f32.gmra.mxu0 %v2138
  %v2140 = vpop.f32.mrf.mxu0
  %v2141 = vadd.f32 %v2016, %v2140
  %v2142 = vpop.f32.mrf.mxu0
  %v2143 = vand.u32 %v26, 4294901760
  %2144 = vmatprep.mubr.f32.mxu0 %v2143
  %v2145 = vand.u32 %v25, 4294901760
  %2146 = vmatmul.mubr.f32.gmra.mxu0 %v2145
  %v2147 = vpop.f32.mrf.mxu0
  %v2148 = vadd.f32 %v2023, %v2147
  %v2149 = vpop.f32.mrf.mxu0
  %2150 = vdwg.mxu0
  %2151 = vst [vmem:[%s2] sm:$0xff] %v2127
  %2152 = vst [vmem:[%s2 + $0x8] sm:$0xff] %v2134
  %2153 = vst [vmem:[%s2 + $0x10] sm:$0xff] %v2141
  %2154 = vst [vmem:[%s2 + $0x18] sm:$0xff] %v2148
  // Predicated region
  $region10: #{downsample_forward.1} parent=0 // pred_check
    _
  $region11: #{downsample_forward.1} parent=0 // pred_check_branch
    %2156 = sbr.rel (0) target = $region13
  $region12: #{downsample_forward.1} parent=0 // pred_region
    _
  $region13: #{downsample_forward.1} parent=0 // pred_fallthru
    _
  // Predicated region
  $region14: #{downsample_forward.1} parent=0 // pred_check
    _
  $region15: #{downsample_forward.1} parent=0 // pred_check_branch
    %2158 = sbr.rel (0) target = $region17
  $region16: #{downsample_forward.1} parent=0 // pred_region
    _
  $region17: #{downsample_forward.1} parent=0 // pred_fallthru
    _

</llo_original>
